<compile_context>
chip_gen: v5e
topology: v5e:2x2
jax: 0.10.0
libtpu: 0.0.40
codegen_flags: <defaults>
</compile_context>

<pallas_src>
import functools

import jax
import jax.numpy as jnp
from jax.experimental import pallas as pl
from jax.experimental.pallas import tpu as pltpu


# ----------------------------- helpers (used in & out of kernel) -------------

def _layernorm(x, gamma, beta, eps=1e-6):
    # PyTorch nn.LayerNorm(eps=1e-6) semantics: biased variance, eps in sqrt.
    mean = jnp.mean(x, axis=-1, keepdims=True)
    var = jnp.mean(jnp.square(x - mean), axis=-1, keepdims=True)
    return (x - mean) * jax.lax.rsqrt(var + eps) * gamma + beta


# ------------------------------- fused kernel --------------------------------

def _encoder_kernel(x_ref, bias_ref, wqkv_ref, wo_ref, attn_g_ref, attn_b_ref,
                    w1_ref, b1_ref, w2_ref, b2_ref, ffn_g_ref, ffn_b_ref,
                    out_ref, *, n_head, d_k, d_v):
    Nr, D = out_ref.shape                     # Nr = batch_block * S rows
    H, dk, dv = n_head, d_k, d_v
    Bb = bias_ref.shape[1]
    S = Nr // Bb
    cdt = wqkv_ref.dtype                      # matmul-operand dtype (bf16)
    layer = pl.program_id(1)

    # Load this row-block's (already layernormed) embeddings once, at layer 0.
    # The output block is the resident activation buffer across the layer axis.
    @pl.when(layer == 0)
    def _():
        out_ref[...] = x_ref[...]

    x = out_ref[...]                                        # (Nr, D) f32

    # a = 0: td_attn (td_mask), a = 1: lr_attn (lr_mask) -- reference ordering.
    # Projections are bias-free (SISCP / jadore801120 MHA); the FFN has biases.
    for a in range(2):
        wqkv = wqkv_ref[0, a]                               # (D, H*(2dk+dv)); Q cols pre-scaled by 1/sqrt(dk)
        wo = wo_ref[0, a]                                   # (H*dv, D)
        bias = bias_ref[a].astype(jnp.float32)              # (Bb, S, S) additive
        qkv = jnp.dot(x.astype(cdt), wqkv,
                      preferred_element_type=jnp.float32)   # fused QKV, K = D
        heads = []
        for h in range(H):                                  # small static unroll
            qh = qkv[:, h * dk:(h + 1) * dk].reshape(Bb, S, dk)
            kh = qkv[:, H * dk + h * dk:H * dk + (h + 1) * dk].reshape(Bb, S, dk)
            vh = qkv[:, 2 * H * dk + h * dv:2 * H * dk + (h + 1) * dv].reshape(Bb, S, dv)
            s = jnp.einsum('bqd,bkd->bqk', qh.astype(cdt), kh.astype(cdt),
                           preferred_element_type=jnp.float32)
            s = s + bias
            s = s - jnp.max(s, axis=-1, keepdims=True)
            p = jnp.exp(s)
            p = p * pl.reciprocal(jnp.sum(p, axis=-1, keepdims=True), approx=True)
            oh = jnp.einsum('bqk,bkd->bqd', p.astype(cdt), vh.astype(cdt),
                            preferred_element_type=jnp.float32)
            heads.append(oh.astype(cdt))
        # gather heads -> one (Nr, H*dv) buffer -> SINGLE W_O matmul with K=H*dv
        o_cat = heads[0] if H == 1 else jnp.concatenate(heads, axis=-1)
        o_cat = o_cat.reshape(Nr, H * dv)
        y = jnp.dot(o_cat, wo, preferred_element_type=jnp.float32) + x
        x = _layernorm(y, attn_g_ref[0, a], attn_b_ref[0, a])

    # position-wise FFN (biased), residual, LayerNorm
    h1 = jnp.dot(x.astype(cdt), w1_ref[0],
                 preferred_element_type=jnp.float32) + b1_ref[0]
    h1 = jnp.maximum(h1, 0.0).astype(cdt)                   # ReLU + cast in one step
    y = jnp.dot(h1, w2_ref[0],
                preferred_element_type=jnp.float32) + b2_ref[0] + x
    out_ref[...] = _layernorm(y, ffn_g_ref[0], ffn_b_ref[0])


# ------------------------------ pallas_call glue ------------------------------

def fused_tree_encoder(x, attn_bias, params, *, n_head, d_k, d_v, batch_block=1):
    B, S, D = x.shape
    assert B % batch_block == 0
    NB = B // batch_block
    Nr = batch_block * S
    L = params['wqkv'].shape[0]
    x2 = x.reshape(B * S, D).astype(jnp.float32)

    def layer_spec(shape):
        # Layer-indexed weight: block over the layer axis, full in all others.
        nrest = len(shape) - 1
        return pl.BlockSpec((1,) + tuple(shape[1:]),
                            lambda rb, l, _n=nrest: (l,) + (0,) * _n)

    # Row-block spec: constant over the layer axis => resident across all layers
    # of one batch block (used for both x and the output/activation buffer).
    row_spec = pl.BlockSpec((Nr, D), lambda rb, l: (rb, 0))
    bias_spec = pl.BlockSpec((2, batch_block, S, S), lambda rb, l: (0, rb, 0, 0))

    # Crude VMEM budget: double-buffered per-layer weights + resident
    # bias / activation blocks + the bf16 FFN intermediate + headroom.
    per_layer_w = sum(params[k].size // L * params[k].dtype.itemsize
                      for k in ('wqkv', 'wo', 'attn_g', 'attn_b',
                                'w1', 'b1', 'w2', 'b2', 'ffn_g', 'ffn_b'))
    bias_block = attn_bias.size // NB * attn_bias.dtype.itemsize
    act_block = Nr * D * 4
    d_inner = params['w1'].shape[-1]
    ffn_tmp = Nr * d_inner * 4
    vmem_limit = min(96 * 1024 * 1024,
                     max(32 * 1024 * 1024,
                         int(2 * per_layer_w + 2 * bias_block + 4 * act_block
                             + ffn_tmp) + (4 << 20)))

    out = pl.pallas_call(
        functools.partial(_encoder_kernel, n_head=n_head, d_k=d_k, d_v=d_v),
        out_shape=jax.ShapeDtypeStruct((B * S, D), jnp.float32),
        grid=(NB, L),
        in_specs=[
            row_spec,
            bias_spec,
            layer_spec(params['wqkv'].shape),
            layer_spec(params['wo'].shape),
            layer_spec(params['attn_g'].shape),
            layer_spec(params['attn_b'].shape),
            layer_spec(params['w1'].shape),
            layer_spec(params['b1'].shape),
            layer_spec(params['w2'].shape),
            layer_spec(params['b2'].shape),
            layer_spec(params['ffn_g'].shape),
            layer_spec(params['ffn_b'].shape),
        ],
        out_specs=row_spec,
        compiler_params=pltpu.CompilerParams(
            dimension_semantics=("parallel", "arbitrary"),
            vmem_limit_bytes=vmem_limit),
    )(x2, attn_bias,
      params['wqkv'], params['wo'], params['attn_g'], params['attn_b'],
      params['w1'], params['b1'], params['w2'], params['b2'],
      params['ffn_g'], params['ffn_b'])
    return out.reshape(B, S, D)


# --------------------------- parameter construction ---------------------------

def init_params(key, *, vocab, n_levels, d_model, n_head, d_k, d_v, d_inner,
                n_layers, hie_type='cat', w_dtype=jnp.bfloat16):
    posi_dim = d_model // 2 if hie_type == 'cat' else d_model
    ks = jax.random.split(key, 8)

    def nrm(k, shape, scale=0.02):
        return (scale * jax.random.normal(k, shape)).astype(w_dtype)

    # stacked per-layer weights: axis 0 = layer, axis 1 = {0: td_attn, 1: lr_attn}
    # fused [Wq | Wk | Wv] along the output axis (bias-free projections).
    wqkv = nrm(ks[3], (n_layers, 2, d_model, 2 * n_head * d_k + n_head * d_v))
    # fold the softmax temperature 1/sqrt(d_k) into the Q columns (free at run time)
    wqkv = wqkv.at[:, :, :, :n_head * d_k].multiply(1.0 / (d_k ** 0.5))

    return {
        'word_emb': jax.random.normal(ks[0], (vocab, d_model), jnp.float32),
        'level_emb': jax.random.normal(ks[1], (n_levels, posi_dim),
                                       jnp.float32).at[0].set(0.0),   # padding_idx=0
        'sibling_emb': jax.random.normal(ks[2], (n_levels, posi_dim),
                                         jnp.float32).at[0].set(0.0),  # padding_idx=0
        'ln0_g': jnp.ones((1, d_model), jnp.float32),
        'ln0_b': jnp.zeros((1, d_model), jnp.float32),
        'wqkv': wqkv,
        'wo':   nrm(ks[4], (n_layers, 2, n_head * d_v, d_model)),
        'attn_g': jnp.ones((n_layers, 2, 1, d_model), jnp.float32),
        'attn_b': jnp.zeros((n_layers, 2, 1, d_model), jnp.float32),
        'w1': nrm(ks[5], (n_layers, d_model, d_inner)),
        'b1': jnp.zeros((n_layers, 1, d_inner), jnp.float32),
        'w2': nrm(ks[6], (n_layers, d_inner, d_model)),
        'b2': jnp.zeros((n_layers, 1, d_model), jnp.float32),
        'ffn_g': jnp.ones((n_layers, 1, d_model), jnp.float32),
        'ffn_b': jnp.zeros((n_layers, 1, d_model), jnp.float32),
    }


# ------------------------------ full forward pass ------------------------------

def sibling_tree_encoder(params, src_seq, sibling_posi_seq, level_seq, lr_mask,
                         td_mask, *, d_model, n_head, d_k, d_v,
                         scale_emb=True, hie_type='cat', batch_block=1):
    # embedding gathers + merge + encoder-level LayerNorm (cheap, XLA glue)
    word = jnp.take(params['word_emb'], src_seq, axis=0)          # (B, S, D)
    lvl = jnp.take(params['level_emb'], level_seq, axis=0)
    sib = jnp.take(params['sibling_emb'], sibling_posi_seq, axis=0)
    hie = (jnp.concatenate([lvl, sib], axis=-1) if hie_type == 'cat'
           else lvl + sib)

    scale = d_model ** 0.5 if scale_emb else 1.0
    x0 = (word * scale + hie).astype(jnp.float32)                 # dropout = identity
    x0 = _layernorm(x0, params['ln0_g'], params['ln0_b'])

    # additive attention bias replacing masked_fill(mask==0, -1e9), stored in
    # bf16 (index 0 = td, applied first; 1 = lr).  The masks always keep the
    # diagonal, so no row is ever fully masked.
    attn_bias = jnp.stack([(td_mask - 1.0) * 1e9,
                           (lr_mask - 1.0) * 1e9]).astype(jnp.bfloat16)

    # TODO(synk): return_attns=True (per-layer attention maps) is not exposed by
    # the fused kernel; only the encoder output is returned.
    return fused_tree_encoder(x0, attn_bias, params,
                              n_head=n_head, d_k=d_k, d_v=d_v,
                              batch_block=batch_block)


# ------------------------------------ main ------------------------------------

if __name__ == "__main__":
    # lane/sublane-friendly demo shapes: D = H*dk = H*dv = 128, 16 rows / block
    B, S = 2, 16
    d_model, n_head, d_k, d_v, d_inner = 128, 2, 64, 64, 256
    n_layers = 2
    vocab, n_levels = 64, 50

    key = jax.random.PRNGKey(0)
    k_par, k_src, k_sib, k_lvl, k_lr, k_td = jax.random.split(key, 6)

    params = init_params(k_par, vocab=vocab, n_levels=n_levels, d_model=d_model,
                         n_head=n_head, d_k=d_k, d_v=d_v, d_inner=d_inner,
                         n_layers=n_layers)

    src_seq = jax.random.randint(k_src, (B, S), 0, vocab)
    sibling_posi_seq = jax.random.randint(k_sib, (B, S), 1, n_levels)
    level_seq = jax.random.randint(k_lvl, (B, S), 1, n_levels)

    eye = jnp.eye(S, dtype=jnp.float32)[None]
    lr_mask = jnp.maximum(
        (jax.random.uniform(k_lr, (B, S, S)) > 0.3).astype(jnp.float32), eye)
    td_mask = jnp.maximum(
        (jax.random.uniform(k_td, (B, S, S)) > 0.3).astype(jnp.float32), eye)

    out = sibling_tree_encoder(params, src_seq, sibling_posi_seq, level_seq,
                               lr_mask, td_mask, d_model=d_model, n_head=n_head,
                               d_k=d_k, d_v=d_v, batch_block=1)
    out = jax.block_until_ready(out)
    assert out.shape == (B, S, d_model)
    assert bool(jnp.all(jnp.isfinite(out)))
    print("KERNEL_OK")
</pallas_src>

<mosaic_0001>
module attributes {stable_mosaic.version = 11 : i64} {
  func.func @_encoder_kernel(%arg0: i32, %arg1: i32, %arg2: memref<16x128xf32, #tpu.memory_space<vmem>>, %arg3: memref<2x1x16x16xbf16, #tpu.memory_space<vmem>>, %arg4: memref<1x2x128x384xbf16, #tpu.memory_space<vmem>>, %arg5: memref<1x2x128x128xbf16, #tpu.memory_space<vmem>>, %arg6: memref<1x2x1x128xf32, #tpu.memory_space<vmem>>, %arg7: memref<1x2x1x128xf32, #tpu.memory_space<vmem>>, %arg8: memref<1x128x256xbf16, #tpu.memory_space<vmem>>, %arg9: memref<1x1x256xf32, #tpu.memory_space<vmem>>, %arg10: memref<1x256x128xbf16, #tpu.memory_space<vmem>>, %arg11: memref<1x1x128xf32, #tpu.memory_space<vmem>>, %arg12: memref<1x1x128xf32, #tpu.memory_space<vmem>>, %arg13: memref<1x1x128xf32, #tpu.memory_space<vmem>>, %arg14: memref<16x128xf32, #tpu.memory_space<vmem>>) attributes {dimension_semantics = [#tpu.dimension_semantics<parallel>, #tpu.dimension_semantics<arbitrary>], iteration_bounds = array<i64: 2, 2>, scalar_prefetch = 0 : i64, scratch_operands = 0 : i64, tpu.core_type = #tpu.core_type<tc>, window_params = [{transform_indices = @transform_0, window_bounds = array<i64: 16, 128>}, {transform_indices = @transform_1, window_bounds = array<i64: 2, 1, 16, 16>}, {transform_indices = @transform_2, window_bounds = array<i64: 1, 2, 128, 384>}, {transform_indices = @transform_3, window_bounds = array<i64: 1, 2, 128, 128>}, {transform_indices = @transform_4, window_bounds = array<i64: 1, 2, 1, 128>}, {transform_indices = @transform_5, window_bounds = array<i64: 1, 2, 1, 128>}, {transform_indices = @transform_6, window_bounds = array<i64: 1, 128, 256>}, {transform_indices = @transform_7, window_bounds = array<i64: 1, 1, 256>}, {transform_indices = @transform_8, window_bounds = array<i64: 1, 256, 128>}, {transform_indices = @transform_9, window_bounds = array<i64: 1, 1, 128>}, {transform_indices = @transform_10, window_bounds = array<i64: 1, 1, 128>}, {transform_indices = @transform_11, window_bounds = array<i64: 1, 1, 128>}, {transform_indices = @transform_12, window_bounds = array<i64: 16, 128>}]} {
    %c0_i32 = arith.constant 0 : i32
    %0 = arith.cmpi eq, %arg1, %c0_i32 : i32
    %1 = arith.extui %0 : i1 to i32
    %c0_i32_0 = arith.constant 0 : i32
    %2 = arith.cmpi ne, %1, %c0_i32_0 : i32
    scf.if %2 {
      %c0_98 = arith.constant 0 : index
      %c0_99 = arith.constant 0 : index
      %224 = vector.load %arg2[%c0_98, %c0_99] : memref<16x128xf32, #tpu.memory_space<vmem>>, vector<16x128xf32>
      %c0_100 = arith.constant 0 : index
      %c0_101 = arith.constant 0 : index
      %225 = vector.load %arg14[%c0_100, %c0_101] : memref<16x128xf32, #tpu.memory_space<vmem>>, vector<16x128xf32>
      tpu.vector_store %arg14[%c0_100, %c0_101], %224 {strides = array<i32>} : memref<16x128xf32, #tpu.memory_space<vmem>>, vector<16x128xf32>,
    } else {
    }
    %c0 = arith.constant 0 : index
    %c0_1 = arith.constant 0 : index
    %3 = vector.load %arg14[%c0, %c0_1] : memref<16x128xf32, #tpu.memory_space<vmem>>, vector<16x128xf32>
    %c0_2 = arith.constant 0 : index
    %c0_3 = arith.constant 0 : index
    %c0_4 = arith.constant 0 : index
    %c0_5 = arith.constant 0 : index
    %4 = vector.load %arg4[%c0_2, %c0_3, %c0_4, %c0_5] : memref<1x2x128x384xbf16, #tpu.memory_space<vmem>>, vector<1x1x128x384xbf16>
    %5 = vector.shape_cast %4 : vector<1x1x128x384xbf16> to vector<128x384xbf16>
    %c0_6 = arith.constant 0 : index
    %c0_7 = arith.constant 0 : index
    %c0_8 = arith.constant 0 : index
    %c0_9 = arith.constant 0 : index
    %6 = vector.load %arg5[%c0_6, %c0_7, %c0_8, %c0_9] : memref<1x2x128x128xbf16, #tpu.memory_space<vmem>>, vector<1x1x128x128xbf16>
    %7 = vector.shape_cast %6 : vector<1x1x128x128xbf16> to vector<128x128xbf16>
    %c0_10 = arith.constant 0 : index
    %c0_11 = arith.constant 0 : index
    %c0_12 = arith.constant 0 : index
    %c0_13 = arith.constant 0 : index
    %8 = vector.load %arg3[%c0_10, %c0_11, %c0_12, %c0_13] : memref<2x1x16x16xbf16, #tpu.memory_space<vmem>>, vector<1x1x16x16xbf16>
    %9 = vector.shape_cast %8 : vector<1x1x16x16xbf16> to vector<1x16x16xbf16>
    %10 = arith.extf %9 : vector<1x16x16xbf16> to vector<1x16x16xf32>
    %11 = arith.truncf %3 : vector<16x128xf32> to vector<16x128xbf16>
    %cst = arith.constant dense<0.000000e+00> : vector<16x384xf32>
    %12 = tpu.matmul %11, %5, %cst {dimension_numbers = #tpu.dot_dimension_numbers<[1], [0], [0], [1], [0, 0, 1, 1], [], []>} : vector<16x128xbf16>, vector<128x384xbf16>, vector<16x384xf32> -> vector<16x384xf32>
    %13 = vector.extract_strided_slice %12 {offsets = [0, 0], sizes = [16, 64], strides = [1, 1]} : vector<16x384xf32> to vector<16x64xf32>
    %14 = vector.shape_cast %13 : vector<16x64xf32> to vector<1x16x64xf32>
    %15 = vector.extract_strided_slice %12 {offsets = [0, 128], sizes = [16, 64], strides = [1, 1]} : vector<16x384xf32> to vector<16x64xf32>
    %16 = vector.shape_cast %15 : vector<16x64xf32> to vector<1x16x64xf32>
    %17 = vector.extract_strided_slice %12 {offsets = [0, 256], sizes = [16, 64], strides = [1, 1]} : vector<16x384xf32> to vector<16x64xf32>
    %18 = vector.shape_cast %17 : vector<16x64xf32> to vector<1x16x64xf32>
    %19 = arith.truncf %14 : vector<1x16x64xf32> to vector<1x16x64xbf16>
    %20 = arith.truncf %16 : vector<1x16x64xf32> to vector<1x16x64xbf16>
    "tpu.trace_start"() <{level = 10 : i32, message = "bqd,bkd->bqk"}> : () -> ()
    %cst_14 = arith.constant dense<0.000000e+00> : vector<1x16x16xf32>
    %21 = tpu.matmul %19, %20, %cst_14 {dimension_numbers = #tpu.dot_dimension_numbers<[2], [2], [1], [1], [0, 0, 0, 1, 1, 1], [0], [0]>} : vector<1x16x64xbf16>, vector<1x16x64xbf16>, vector<1x16x16xf32> -> vector<1x16x16xf32>
    "tpu.trace_stop"() : () -> ()
    %22 = arith.addf %21, %10 : vector<1x16x16xf32>
    %cst_15 = arith.constant dense<0xFF800000> : vector<1x16xf32>
    %23 = vector.multi_reduction <maximumf>, %22, %cst_15 [2] : vector<1x16x16xf32> to vector<1x16xf32>
    %24 = vector.shape_cast %23 : vector<1x16xf32> to vector<1x16x1xf32>
    %25 = vector.broadcast %24 : vector<1x16x1xf32> to vector<1x16x16xf32>
    %26 = arith.subf %22, %25 : vector<1x16x16xf32>
    %27 = math.exp %26 : vector<1x16x16xf32>
    %cst_16 = arith.constant dense<0.000000e+00> : vector<1x16xf32>
    %28 = vector.multi_reduction <add>, %27, %cst_16 [2] : vector<1x16x16xf32> to vector<1x16xf32>
    %29 = vector.shape_cast %28 : vector<1x16xf32> to vector<1x16x1xf32>
    %30 = tpu.reciprocal %29 {approx = true} : vector<1x16x1xf32> -> vector<1x16x1xf32>
    %31 = vector.broadcast %30 : vector<1x16x1xf32> to vector<1x16x16xf32>
    %32 = arith.mulf %27, %31 : vector<1x16x16xf32>
    %33 = arith.truncf %32 : vector<1x16x16xf32> to vector<1x16x16xbf16>
    %34 = arith.truncf %18 : vector<1x16x64xf32> to vector<1x16x64xbf16>
    "tpu.trace_start"() <{level = 10 : i32, message = "bqk,bkd->bqd"}> : () -> ()
    %cst_17 = arith.constant dense<0.000000e+00> : vector<1x16x64xf32>
    %35 = tpu.matmul %33, %34, %cst_17 {dimension_numbers = #tpu.dot_dimension_numbers<[2], [1], [1], [2], [0, 0, 0, 1, 1, 2], [0], [0]>} : vector<1x16x16xbf16>, vector<1x16x64xbf16>, vector<1x16x64xf32> -> vector<1x16x64xf32>
    "tpu.trace_stop"() : () -> ()
    %36 = arith.truncf %35 : vector<1x16x64xf32> to vector<1x16x64xbf16>
    %37 = vector.extract_strided_slice %12 {offsets = [0, 64], sizes = [16, 64], strides = [1, 1]} : vector<16x384xf32> to vector<16x64xf32>
    %38 = vector.shape_cast %37 : vector<16x64xf32> to vector<1x16x64xf32>
    %39 = vector.extract_strided_slice %12 {offsets = [0, 192], sizes = [16, 64], strides = [1, 1]} : vector<16x384xf32> to vector<16x64xf32>
    %40 = vector.shape_cast %39 : vector<16x64xf32> to vector<1x16x64xf32>
    %41 = vector.extract_strided_slice %12 {offsets = [0, 320], sizes = [16, 64], strides = [1, 1]} : vector<16x384xf32> to vector<16x64xf32>
    %42 = vector.shape_cast %41 : vector<16x64xf32> to vector<1x16x64xf32>
    %43 = arith.truncf %38 : vector<1x16x64xf32> to vector<1x16x64xbf16>
    %44 = arith.truncf %40 : vector<1x16x64xf32> to vector<1x16x64xbf16>
    "tpu.trace_start"() <{level = 10 : i32, message = "bqd,bkd->bqk"}> : () -> ()
    %cst_18 = arith.constant dense<0.000000e+00> : vector<1x16x16xf32>
    %45 = tpu.matmul %43, %44, %cst_18 {dimension_numbers = #tpu.dot_dimension_numbers<[2], [2], [1], [1], [0, 0, 0, 1, 1, 1], [0], [0]>} : vector<1x16x64xbf16>, vector<1x16x64xbf16>, vector<1x16x16xf32> -> vector<1x16x16xf32>
    "tpu.trace_stop"() : () -> ()
    %46 = arith.addf %45, %10 : vector<1x16x16xf32>
    %cst_19 = arith.constant dense<0xFF800000> : vector<1x16xf32>
    %47 = vector.multi_reduction <maximumf>, %46, %cst_19 [2] : vector<1x16x16xf32> to vector<1x16xf32>
    %48 = vector.shape_cast %47 : vector<1x16xf32> to vector<1x16x1xf32>
    %49 = vector.broadcast %48 : vector<1x16x1xf32> to vector<1x16x16xf32>
    %50 = arith.subf %46, %49 : vector<1x16x16xf32>
    %51 = math.exp %50 : vector<1x16x16xf32>
    %cst_20 = arith.constant dense<0.000000e+00> : vector<1x16xf32>
    %52 = vector.multi_reduction <add>, %51, %cst_20 [2] : vector<1x16x16xf32> to vector<1x16xf32>
    %53 = vector.shape_cast %52 : vector<1x16xf32> to vector<1x16x1xf32>
    %54 = tpu.reciprocal %53 {approx = true} : vector<1x16x1xf32> -> vector<1x16x1xf32>
    %55 = vector.broadcast %54 : vector<1x16x1xf32> to vector<1x16x16xf32>
    %56 = arith.mulf %51, %55 : vector<1x16x16xf32>
    %57 = arith.truncf %56 : vector<1x16x16xf32> to vector<1x16x16xbf16>
    %58 = arith.truncf %42 : vector<1x16x64xf32> to vector<1x16x64xbf16>
    "tpu.trace_start"() <{level = 10 : i32, message = "bqk,bkd->bqd"}> : () -> ()
    %cst_21 = arith.constant dense<0.000000e+00> : vector<1x16x64xf32>
    %59 = tpu.matmul %57, %58, %cst_21 {dimension_numbers = #tpu.dot_dimension_numbers<[2], [1], [1], [2], [0, 0, 0, 1, 1, 2], [0], [0]>} : vector<1x16x16xbf16>, vector<1x16x64xbf16>, vector<1x16x64xf32> -> vector<1x16x64xf32>
    "tpu.trace_stop"() : () -> ()
    %60 = arith.truncf %59 : vector<1x16x64xf32> to vector<1x16x64xbf16>
    %61 = tpu.concatenate %36, %60 in 2 : vector<1x16x64xbf16>, vector<1x16x64xbf16> -> vector<1x16x128xbf16>
    %62 = vector.shape_cast %61 : vector<1x16x128xbf16> to vector<16x128xbf16>
    %cst_22 = arith.constant dense<0.000000e+00> : vector<16x128xf32>
    %63 = tpu.matmul %62, %7, %cst_22 {dimension_numbers = #tpu.dot_dimension_numbers<[1], [0], [0], [1], [0, 0, 1, 1], [], []>} : vector<16x128xbf16>, vector<128x128xbf16>, vector<16x128xf32> -> vector<16x128xf32>
    %64 = arith.addf %63, %3 : vector<16x128xf32>
    %c0_23 = arith.constant 0 : index
    %c0_24 = arith.constant 0 : index
    %c0_25 = arith.constant 0 : index
    %c0_26 = arith.constant 0 : index
    %65 = vector.load %arg6[%c0_23, %c0_24, %c0_25, %c0_26] : memref<1x2x1x128xf32, #tpu.memory_space<vmem>>, vector<1x1x1x128xf32>
    %66 = vector.shape_cast %65 : vector<1x1x1x128xf32> to vector<1x128xf32>
    %c0_27 = arith.constant 0 : index
    %c0_28 = arith.constant 0 : index
    %c0_29 = arith.constant 0 : index
    %c0_30 = arith.constant 0 : index
    %67 = vector.load %arg7[%c0_27, %c0_28, %c0_29, %c0_30] : memref<1x2x1x128xf32, #tpu.memory_space<vmem>>, vector<1x1x1x128xf32>
    %68 = vector.shape_cast %67 : vector<1x1x1x128xf32> to vector<1x128xf32>
    %cst_31 = arith.constant dense<0.000000e+00> : vector<16xf32>
    %69 = vector.multi_reduction <add>, %64, %cst_31 [1] : vector<16x128xf32> to vector<16xf32>
    %70 = vector.shape_cast %69 : vector<16xf32> to vector<16x1xf32>
    %cst_32 = arith.constant 1.280000e+02 : f32
    %71 = vector.broadcast %cst_32 : f32 to vector<16x1xf32>
    %72 = arith.divf %70, %71 : vector<16x1xf32>
    %73 = vector.broadcast %72 : vector<16x1xf32> to vector<16x128xf32>
    %74 = arith.subf %64, %73 : vector<16x128xf32>
    %75 = arith.mulf %74, %74 : vector<16x128xf32>
    %cst_33 = arith.constant dense<0.000000e+00> : vector<16xf32>
    %76 = vector.multi_reduction <add>, %75, %cst_33 [1] : vector<16x128xf32> to vector<16xf32>
    %77 = vector.shape_cast %76 : vector<16xf32> to vector<16x1xf32>
    %cst_34 = arith.constant 1.280000e+02 : f32
    %78 = vector.broadcast %cst_34 : f32 to vector<16x1xf32>
    %79 = arith.divf %77, %78 : vector<16x1xf32>
    %80 = vector.broadcast %72 : vector<16x1xf32> to vector<16x128xf32>
    %81 = arith.subf %64, %80 : vector<16x128xf32>
    %cst_35 = arith.constant 9.99999997E-7 : f32
    %82 = vector.broadcast %cst_35 : f32 to vector<16x1xf32>
    %83 = arith.addf %79, %82 : vector<16x1xf32>
    %84 = math.rsqrt %83 : vector<16x1xf32>
    %85 = vector.broadcast %84 : vector<16x1xf32> to vector<16x128xf32>
    %86 = arith.mulf %81, %85 : vector<16x128xf32>
    %87 = vector.broadcast %66 : vector<1x128xf32> to vector<16x128xf32>
    %88 = arith.mulf %86, %87 : vector<16x128xf32>
    %89 = vector.broadcast %68 : vector<1x128xf32> to vector<16x128xf32>
    %90 = arith.addf %88, %89 : vector<16x128xf32>
    %c0_36 = arith.constant 0 : index
    %c1 = arith.constant 1 : index
    %c0_37 = arith.constant 0 : index
    %c0_38 = arith.constant 0 : index
    %91 = vector.load %arg4[%c0_36, %c1, %c0_37, %c0_38] : memref<1x2x128x384xbf16, #tpu.memory_space<vmem>>, vector<1x1x128x384xbf16>
    %92 = vector.shape_cast %91 : vector<1x1x128x384xbf16> to vector<128x384xbf16>
    %c0_39 = arith.constant 0 : index
    %c1_40 = arith.constant 1 : index
    %c0_41 = arith.constant 0 : index
    %c0_42 = arith.constant 0 : index
    %93 = vector.load %arg5[%c0_39, %c1_40, %c0_41, %c0_42] : memref<1x2x128x128xbf16, #tpu.memory_space<vmem>>, vector<1x1x128x128xbf16>
    %94 = vector.shape_cast %93 : vector<1x1x128x128xbf16> to vector<128x128xbf16>
    %c1_43 = arith.constant 1 : index
    %c0_44 = arith.constant 0 : index
    %c0_45 = arith.constant 0 : index
    %c0_46 = arith.constant 0 : index
    %95 = vector.load %arg3[%c1_43, %c0_44, %c0_45, %c0_46] : memref<2x1x16x16xbf16, #tpu.memory_space<vmem>>, vector<1x1x16x16xbf16>
    %96 = vector.shape_cast %95 : vector<1x1x16x16xbf16> to vector<1x16x16xbf16>
    %97 = arith.extf %96 : vector<1x16x16xbf16> to vector<1x16x16xf32>
    %98 = arith.truncf %90 : vector<16x128xf32> to vector<16x128xbf16>
    %cst_47 = arith.constant dense<0.000000e+00> : vector<16x384xf32>
    %99 = tpu.matmul %98, %92, %cst_47 {dimension_numbers = #tpu.dot_dimension_numbers<[1], [0], [0], [1], [0, 0, 1, 1], [], []>} : vector<16x128xbf16>, vector<128x384xbf16>, vector<16x384xf32> -> vector<16x384xf32>
    %100 = vector.extract_strided_slice %99 {offsets = [0, 0], sizes = [16, 64], strides = [1, 1]} : vector<16x384xf32> to vector<16x64xf32>
    %101 = vector.shape_cast %100 : vector<16x64xf32> to vector<1x16x64xf32>
    %102 = vector.extract_strided_slice %99 {offsets = [0, 128], sizes = [16, 64], strides = [1, 1]} : vector<16x384xf32> to vector<16x64xf32>
    %103 = vector.shape_cast %102 : vector<16x64xf32> to vector<1x16x64xf32>
    %104 = vector.extract_strided_slice %99 {offsets = [0, 256], sizes = [16, 64], strides = [1, 1]} : vector<16x384xf32> to vector<16x64xf32>
    %105 = vector.shape_cast %104 : vector<16x64xf32> to vector<1x16x64xf32>
    %106 = arith.truncf %101 : vector<1x16x64xf32> to vector<1x16x64xbf16>
    %107 = arith.truncf %103 : vector<1x16x64xf32> to vector<1x16x64xbf16>
    "tpu.trace_start"() <{level = 10 : i32, message = "bqd,bkd->bqk"}> : () -> ()
    %cst_48 = arith.constant dense<0.000000e+00> : vector<1x16x16xf32>
    %108 = tpu.matmul %106, %107, %cst_48 {dimension_numbers = #tpu.dot_dimension_numbers<[2], [2], [1], [1], [0, 0, 0, 1, 1, 1], [0], [0]>} : vector<1x16x64xbf16>, vector<1x16x64xbf16>, vector<1x16x16xf32> -> vector<1x16x16xf32>
    "tpu.trace_stop"() : () -> ()
    %109 = arith.addf %108, %97 : vector<1x16x16xf32>
    %cst_49 = arith.constant dense<0xFF800000> : vector<1x16xf32>
    %110 = vector.multi_reduction <maximumf>, %109, %cst_49 [2] : vector<1x16x16xf32> to vector<1x16xf32>
    %111 = vector.shape_cast %110 : vector<1x16xf32> to vector<1x16x1xf32>
    %112 = vector.broadcast %111 : vector<1x16x1xf32> to vector<1x16x16xf32>
    %113 = arith.subf %109, %112 : vector<1x16x16xf32>
    %114 = math.exp %113 : vector<1x16x16xf32>
    %cst_50 = arith.constant dense<0.000000e+00> : vector<1x16xf32>
    %115 = vector.multi_reduction <add>, %114, %cst_50 [2] : vector<1x16x16xf32> to vector<1x16xf32>
    %116 = vector.shape_cast %115 : vector<1x16xf32> to vector<1x16x1xf32>
    %117 = tpu.reciprocal %116 {approx = true} : vector<1x16x1xf32> -> vector<1x16x1xf32>
    %118 = vector.broadcast %117 : vector<1x16x1xf32> to vector<1x16x16xf32>
    %119 = arith.mulf %114, %118 : vector<1x16x16xf32>
    %120 = arith.truncf %119 : vector<1x16x16xf32> to vector<1x16x16xbf16>
    %121 = arith.truncf %105 : vector<1x16x64xf32> to vector<1x16x64xbf16>
    "tpu.trace_start"() <{level = 10 : i32, message = "bqk,bkd->bqd"}> : () -> ()
    %cst_51 = arith.constant dense<0.000000e+00> : vector<1x16x64xf32>
    %122 = tpu.matmul %120, %121, %cst_51 {dimension_numbers = #tpu.dot_dimension_numbers<[2], [1], [1], [2], [0, 0, 0, 1, 1, 2], [0], [0]>} : vector<1x16x16xbf16>, vector<1x16x64xbf16>, vector<1x16x64xf32> -> vector<1x16x64xf32>
    "tpu.trace_stop"() : () -> ()
    %123 = arith.truncf %122 : vector<1x16x64xf32> to vector<1x16x64xbf16>
    %124 = vector.extract_strided_slice %99 {offsets = [0, 64], sizes = [16, 64], strides = [1, 1]} : vector<16x384xf32> to vector<16x64xf32>
    %125 = vector.shape_cast %124 : vector<16x64xf32> to vector<1x16x64xf32>
    %126 = vector.extract_strided_slice %99 {offsets = [0, 192], sizes = [16, 64], strides = [1, 1]} : vector<16x384xf32> to vector<16x64xf32>
    %127 = vector.shape_cast %126 : vector<16x64xf32> to vector<1x16x64xf32>
    %128 = vector.extract_strided_slice %99 {offsets = [0, 320], sizes = [16, 64], strides = [1, 1]} : vector<16x384xf32> to vector<16x64xf32>
    %129 = vector.shape_cast %128 : vector<16x64xf32> to vector<1x16x64xf32>
    %130 = arith.truncf %125 : vector<1x16x64xf32> to vector<1x16x64xbf16>
    %131 = arith.truncf %127 : vector<1x16x64xf32> to vector<1x16x64xbf16>
    "tpu.trace_start"() <{level = 10 : i32, message = "bqd,bkd->bqk"}> : () -> ()
    %cst_52 = arith.constant dense<0.000000e+00> : vector<1x16x16xf32>
    %132 = tpu.matmul %130, %131, %cst_52 {dimension_numbers = #tpu.dot_dimension_numbers<[2], [2], [1], [1], [0, 0, 0, 1, 1, 1], [0], [0]>} : vector<1x16x64xbf16>, vector<1x16x64xbf16>, vector<1x16x16xf32> -> vector<1x16x16xf32>
    "tpu.trace_stop"() : () -> ()
    %133 = arith.addf %132, %97 : vector<1x16x16xf32>
    %cst_53 = arith.constant dense<0xFF800000> : vector<1x16xf32>
    %134 = vector.multi_reduction <maximumf>, %133, %cst_53 [2] : vector<1x16x16xf32> to vector<1x16xf32>
    %135 = vector.shape_cast %134 : vector<1x16xf32> to vector<1x16x1xf32>
    %136 = vector.broadcast %135 : vector<1x16x1xf32> to vector<1x16x16xf32>
    %137 = arith.subf %133, %136 : vector<1x16x16xf32>
    %138 = math.exp %137 : vector<1x16x16xf32>
    %cst_54 = arith.constant dense<0.000000e+00> : vector<1x16xf32>
    %139 = vector.multi_reduction <add>, %138, %cst_54 [2] : vector<1x16x16xf32> to vector<1x16xf32>
    %140 = vector.shape_cast %139 : vector<1x16xf32> to vector<1x16x1xf32>
    %141 = tpu.reciprocal %140 {approx = true} : vector<1x16x1xf32> -> vector<1x16x1xf32>
    %142 = vector.broadcast %141 : vector<1x16x1xf32> to vector<1x16x16xf32>
    %143 = arith.mulf %138, %142 : vector<1x16x16xf32>
    %144 = arith.truncf %143 : vector<1x16x16xf32> to vector<1x16x16xbf16>
    %145 = arith.truncf %129 : vector<1x16x64xf32> to vector<1x16x64xbf16>
    "tpu.trace_start"() <{level = 10 : i32, message = "bqk,bkd->bqd"}> : () -> ()
    %cst_55 = arith.constant dense<0.000000e+00> : vector<1x16x64xf32>
    %146 = tpu.matmul %144, %145, %cst_55 {dimension_numbers = #tpu.dot_dimension_numbers<[2], [1], [1], [2], [0, 0, 0, 1, 1, 2], [0], [0]>} : vector<1x16x16xbf16>, vector<1x16x64xbf16>, vector<1x16x64xf32> -> vector<1x16x64xf32>
    "tpu.trace_stop"() : () -> ()
    %147 = arith.truncf %146 : vector<1x16x64xf32> to vector<1x16x64xbf16>
    %148 = tpu.concatenate %123, %147 in 2 : vector<1x16x64xbf16>, vector<1x16x64xbf16> -> vector<1x16x128xbf16>
    %149 = vector.shape_cast %148 : vector<1x16x128xbf16> to vector<16x128xbf16>
    %cst_56 = arith.constant dense<0.000000e+00> : vector<16x128xf32>
    %150 = tpu.matmul %149, %94, %cst_56 {dimension_numbers = #tpu.dot_dimension_numbers<[1], [0], [0], [1], [0, 0, 1, 1], [], []>} : vector<16x128xbf16>, vector<128x128xbf16>, vector<16x128xf32> -> vector<16x128xf32>
    %151 = arith.addf %150, %90 : vector<16x128xf32>
    %c0_57 = arith.constant 0 : index
    %c1_58 = arith.constant 1 : index
    %c0_59 = arith.constant 0 : index
    %c0_60 = arith.constant 0 : index
    %152 = vector.load %arg6[%c0_57, %c1_58, %c0_59, %c0_60] : memref<1x2x1x128xf32, #tpu.memory_space<vmem>>, vector<1x1x1x128xf32>
    %153 = vector.shape_cast %152 : vector<1x1x1x128xf32> to vector<1x128xf32>
    %c0_61 = arith.constant 0 : index
    %c1_62 = arith.constant 1 : index
    %c0_63 = arith.constant 0 : index
    %c0_64 = arith.constant 0 : index
    %154 = vector.load %arg7[%c0_61, %c1_62, %c0_63, %c0_64] : memref<1x2x1x128xf32, #tpu.memory_space<vmem>>, vector<1x1x1x128xf32>
    %155 = vector.shape_cast %154 : vector<1x1x1x128xf32> to vector<1x128xf32>
    %cst_65 = arith.constant dense<0.000000e+00> : vector<16xf32>
    %156 = vector.multi_reduction <add>, %151, %cst_65 [1] : vector<16x128xf32> to vector<16xf32>
    %157 = vector.shape_cast %156 : vector<16xf32> to vector<16x1xf32>
    %cst_66 = arith.constant 1.280000e+02 : f32
    %158 = vector.broadcast %cst_66 : f32 to vector<16x1xf32>
    %159 = arith.divf %157, %158 : vector<16x1xf32>
    %160 = vector.broadcast %159 : vector<16x1xf32> to vector<16x128xf32>
    %161 = arith.subf %151, %160 : vector<16x128xf32>
    %162 = arith.mulf %161, %161 : vector<16x128xf32>
    %cst_67 = arith.constant dense<0.000000e+00> : vector<16xf32>
    %163 = vector.multi_reduction <add>, %162, %cst_67 [1] : vector<16x128xf32> to vector<16xf32>
    %164 = vector.shape_cast %163 : vector<16xf32> to vector<16x1xf32>
    %cst_68 = arith.constant 1.280000e+02 : f32
    %165 = vector.broadcast %cst_68 : f32 to vector<16x1xf32>
    %166 = arith.divf %164, %165 : vector<16x1xf32>
    %167 = vector.broadcast %159 : vector<16x1xf32> to vector<16x128xf32>
    %168 = arith.subf %151, %167 : vector<16x128xf32>
    %cst_69 = arith.constant 9.99999997E-7 : f32
    %169 = vector.broadcast %cst_69 : f32 to vector<16x1xf32>
    %170 = arith.addf %166, %169 : vector<16x1xf32>
    %171 = math.rsqrt %170 : vector<16x1xf32>
    %172 = vector.broadcast %171 : vector<16x1xf32> to vector<16x128xf32>
    %173 = arith.mulf %168, %172 : vector<16x128xf32>
    %174 = vector.broadcast %153 : vector<1x128xf32> to vector<16x128xf32>
    %175 = arith.mulf %173, %174 : vector<16x128xf32>
    %176 = vector.broadcast %155 : vector<1x128xf32> to vector<16x128xf32>
    %177 = arith.addf %175, %176 : vector<16x128xf32>
    %178 = arith.truncf %177 : vector<16x128xf32> to vector<16x128xbf16>
    %c0_70 = arith.constant 0 : index
    %c0_71 = arith.constant 0 : index
    %c0_72 = arith.constant 0 : index
    %179 = vector.load %arg8[%c0_70, %c0_71, %c0_72] : memref<1x128x256xbf16, #tpu.memory_space<vmem>>, vector<1x128x256xbf16>
    %180 = vector.shape_cast %179 : vector<1x128x256xbf16> to vector<128x256xbf16>
    %cst_73 = arith.constant dense<0.000000e+00> : vector<16x256xf32>
    %181 = tpu.matmul %178, %180, %cst_73 {dimension_numbers = #tpu.dot_dimension_numbers<[1], [0], [0], [1], [0, 0, 1, 1], [], []>} : vector<16x128xbf16>, vector<128x256xbf16>, vector<16x256xf32> -> vector<16x256xf32>
    %c0_74 = arith.constant 0 : index
    %c0_75 = arith.constant 0 : index
    %c0_76 = arith.constant 0 : index
    %182 = vector.load %arg9[%c0_74, %c0_75, %c0_76] : memref<1x1x256xf32, #tpu.memory_space<vmem>>, vector<1x1x256xf32>
    %183 = vector.shape_cast %182 : vector<1x1x256xf32> to vector<1x256xf32>
    %184 = vector.broadcast %183 : vector<1x256xf32> to vector<16x256xf32>
    %185 = arith.addf %181, %184 : vector<16x256xf32>
    %cst_77 = arith.constant 0.000000e+00 : f32
    %186 = vector.broadcast %cst_77 : f32 to vector<16x256xf32>
    %187 = arith.maximumf %185, %186 : vector<16x256xf32>
    %188 = arith.truncf %187 : vector<16x256xf32> to vector<16x256xbf16>
    %c0_78 = arith.constant 0 : index
    %c0_79 = arith.constant 0 : index
    %c0_80 = arith.constant 0 : index
    %189 = vector.load %arg10[%c0_78, %c0_79, %c0_80] : memref<1x256x128xbf16, #tpu.memory_space<vmem>>, vector<1x256x128xbf16>
    %190 = vector.shape_cast %189 : vector<1x256x128xbf16> to vector<256x128xbf16>
    %cst_81 = arith.constant dense<0.000000e+00> : vector<16x128xf32>
    %191 = tpu.matmul %188, %190, %cst_81 {dimension_numbers = #tpu.dot_dimension_numbers<[1], [0], [0], [1], [0, 0, 1, 1], [], []>} : vector<16x256xbf16>, vector<256x128xbf16>, vector<16x128xf32> -> vector<16x128xf32>
    %c0_82 = arith.constant 0 : index
    %c0_83 = arith.constant 0 : index
    %c0_84 = arith.constant 0 : index
    %192 = vector.load %arg11[%c0_82, %c0_83, %c0_84] : memref<1x1x128xf32, #tpu.memory_space<vmem>>, vector<1x1x128xf32>
    %193 = vector.shape_cast %192 : vector<1x1x128xf32> to vector<1x128xf32>
    %194 = vector.broadcast %193 : vector<1x128xf32> to vector<16x128xf32>
    %195 = arith.addf %191, %194 : vector<16x128xf32>
    %196 = arith.addf %195, %177 : vector<16x128xf32>
    %c0_85 = arith.constant 0 : index
    %c0_86 = arith.constant 0 : index
    %c0_87 = arith.constant 0 : index
    %197 = vector.load %arg12[%c0_85, %c0_86, %c0_87] : memref<1x1x128xf32, #tpu.memory_space<vmem>>, vector<1x1x128xf32>
    %198 = vector.shape_cast %197 : vector<1x1x128xf32> to vector<1x128xf32>
    %c0_88 = arith.constant 0 : index
    %c0_89 = arith.constant 0 : index
    %c0_90 = arith.constant 0 : index
    %199 = vector.load %arg13[%c0_88, %c0_89, %c0_90] : memref<1x1x128xf32, #tpu.memory_space<vmem>>, vector<1x1x128xf32>
    %200 = vector.shape_cast %199 : vector<1x1x128xf32> to vector<1x128xf32>
    %cst_91 = arith.constant dense<0.000000e+00> : vector<16xf32>
    %201 = vector.multi_reduction <add>, %196, %cst_91 [1] : vector<16x128xf32> to vector<16xf32>
    %202 = vector.shape_cast %201 : vector<16xf32> to vector<16x1xf32>
    %cst_92 = arith.constant 1.280000e+02 : f32
    %203 = vector.broadcast %cst_92 : f32 to vector<16x1xf32>
    %204 = arith.divf %202, %203 : vector<16x1xf32>
    %205 = vector.broadcast %204 : vector<16x1xf32> to vector<16x128xf32>
    %206 = arith.subf %196, %205 : vector<16x128xf32>
    %207 = arith.mulf %206, %206 : vector<16x128xf32>
    %cst_93 = arith.constant dense<0.000000e+00> : vector<16xf32>
    %208 = vector.multi_reduction <add>, %207, %cst_93 [1] : vector<16x128xf32> to vector<16xf32>
    %209 = vector.shape_cast %208 : vector<16xf32> to vector<16x1xf32>
    %cst_94 = arith.constant 1.280000e+02 : f32
    %210 = vector.broadcast %cst_94 : f32 to vector<16x1xf32>
    %211 = arith.divf %209, %210 : vector<16x1xf32>
    %212 = vector.broadcast %204 : vector<16x1xf32> to vector<16x128xf32>
    %213 = arith.subf %196, %212 : vector<16x128xf32>
    %cst_95 = arith.constant 9.99999997E-7 : f32
    %214 = vector.broadcast %cst_95 : f32 to vector<16x1xf32>
    %215 = arith.addf %211, %214 : vector<16x1xf32>
    %216 = math.rsqrt %215 : vector<16x1xf32>
    %217 = vector.broadcast %216 : vector<16x1xf32> to vector<16x128xf32>
    %218 = arith.mulf %213, %217 : vector<16x128xf32>
    %219 = vector.broadcast %198 : vector<1x128xf32> to vector<16x128xf32>
    %220 = arith.mulf %218, %219 : vector<16x128xf32>
    %221 = vector.broadcast %200 : vector<1x128xf32> to vector<16x128xf32>
    %222 = arith.addf %220, %221 : vector<16x128xf32>
    %c0_96 = arith.constant 0 : index
    %c0_97 = arith.constant 0 : index
    %223 = vector.load %arg14[%c0_96, %c0_97] : memref<16x128xf32, #tpu.memory_space<vmem>>, vector<16x128xf32>
    tpu.vector_store %arg14[%c0_96, %c0_97], %222 {strides = array<i32>} : memref<16x128xf32, #tpu.memory_space<vmem>>, vector<16x128xf32>,
    return
  }
  func.func @transform_0(%arg0: i32, %arg1: i32) -> (i32, i32) {
    %c0_i32 = arith.constant 0 : i32
    %c0_i32_0 = arith.constant 0 : i32
    return %arg0, %c0_i32 : i32, i32
  }
  func.func @transform_1(%arg0: i32, %arg1: i32) -> (i32, i32, i32, i32) {
    %c0_i32 = arith.constant 0 : i32
    %c0_i32_0 = arith.constant 0 : i32
    %c0_i32_1 = arith.constant 0 : i32
    %c0_i32_2 = arith.constant 0 : i32
    return %c0_i32, %arg0, %c0_i32_0, %c0_i32_1 : i32, i32, i32, i32
  }
  func.func @transform_2(%arg0: i32, %arg1: i32) -> (i32, i32, i32, i32) {
    %c0_i32 = arith.constant 0 : i32
    %c0_i32_0 = arith.constant 0 : i32
    %c0_i32_1 = arith.constant 0 : i32
    %c0_i32_2 = arith.constant 0 : i32
    return %arg1, %c0_i32, %c0_i32_0, %c0_i32_1 : i32, i32, i32, i32
  }
  func.func @transform_3(%arg0: i32, %arg1: i32) -> (i32, i32, i32, i32) {
    %c0_i32 = arith.constant 0 : i32
    %c0_i32_0 = arith.constant 0 : i32
    %c0_i32_1 = arith.constant 0 : i32
    %c0_i32_2 = arith.constant 0 : i32
    return %arg1, %c0_i32, %c0_i32_0, %c0_i32_1 : i32, i32, i32, i32
  }
  func.func @transform_4(%arg0: i32, %arg1: i32) -> (i32, i32, i32, i32) {
    %c0_i32 = arith.constant 0 : i32
    %c0_i32_0 = arith.constant 0 : i32
    %c0_i32_1 = arith.constant 0 : i32
    %c0_i32_2 = arith.constant 0 : i32
    return %arg1, %c0_i32, %c0_i32_0, %c0_i32_1 : i32, i32, i32, i32
  }
  func.func @transform_5(%arg0: i32, %arg1: i32) -> (i32, i32, i32, i32) {
    %c0_i32 = arith.constant 0 : i32
    %c0_i32_0 = arith.constant 0 : i32
    %c0_i32_1 = arith.constant 0 : i32
    %c0_i32_2 = arith.constant 0 : i32
    return %arg1, %c0_i32, %c0_i32_0, %c0_i32_1 : i32, i32, i32, i32
  }
  func.func @transform_6(%arg0: i32, %arg1: i32) -> (i32, i32, i32) {
    %c0_i32 = arith.constant 0 : i32
    %c0_i32_0 = arith.constant 0 : i32
    %c0_i32_1 = arith.constant 0 : i32
    return %arg1, %c0_i32, %c0_i32_0 : i32, i32, i32
  }
  func.func @transform_7(%arg0: i32, %arg1: i32) -> (i32, i32, i32) {
    %c0_i32 = arith.constant 0 : i32
    %c0_i32_0 = arith.constant 0 : i32
    %c0_i32_1 = arith.constant 0 : i32
    return %arg1, %c0_i32, %c0_i32_0 : i32, i32, i32
  }
  func.func @transform_8(%arg0: i32, %arg1: i32) -> (i32, i32, i32) {
    %c0_i32 = arith.constant 0 : i32
    %c0_i32_0 = arith.constant 0 : i32
    %c0_i32_1 = arith.constant 0 : i32
    return %arg1, %c0_i32, %c0_i32_0 : i32, i32, i32
  }
  func.func @transform_9(%arg0: i32, %arg1: i32) -> (i32, i32, i32) {
    %c0_i32 = arith.constant 0 : i32
    %c0_i32_0 = arith.constant 0 : i32
    %c0_i32_1 = arith.constant 0 : i32
    return %arg1, %c0_i32, %c0_i32_0 : i32, i32, i32
  }
  func.func @transform_10(%arg0: i32, %arg1: i32) -> (i32, i32, i32) {
    %c0_i32 = arith.constant 0 : i32
    %c0_i32_0 = arith.constant 0 : i32
    %c0_i32_1 = arith.constant 0 : i32
    return %arg1, %c0_i32, %c0_i32_0 : i32, i32, i32
  }
  func.func @transform_11(%arg0: i32, %arg1: i32) -> (i32, i32, i32) {
    %c0_i32 = arith.constant 0 : i32
    %c0_i32_0 = arith.constant 0 : i32
    %c0_i32_1 = arith.constant 0 : i32
    return %arg1, %c0_i32, %c0_i32_0 : i32, i32, i32
  }
  func.func @transform_12(%arg0: i32, %arg1: i32) -> (i32, i32) {
    %c0_i32 = arith.constant 0 : i32
    %c0_i32_0 = arith.constant 0 : i32
    return %arg0, %c0_i32 : i32, i32
  }
}

</mosaic_0001>

<llo_original>
// kernel: tpu_custom_call.1
$region0: #{tpu_custom_call.1}
  #allocation0 [shape = 'u32[]', space=smem, size = 0x4, offset = 0x4, fixed_abs, tag = 'smem constant byte address 0x4 - core index']
  #allocation1 [shape = 'u32[72,128]{1,0:T(1,128)}', space=vmem, size = 0x9000, scoped, tag = 'internal scratch']
  #allocation17 [shape = 's32[]', space=sflag, size = 0x4, offset = 0, fixed_abs, tag = 'sflag constant byte address 0x0 - dummy sync flag']
  %s0 = inlined_call_operand.hbm [shape: f32[32,128], index: 0, kind: input, shape index: {}]
  %s1 = inlined_call_operand.hbm [shape: bf16[2,2,16,16], index: 1, kind: input, shape index: {}]
  %s2 = inlined_call_operand.hbm [shape: bf16[2,2,128,384], index: 2, kind: input, shape index: {}]
  %s3 = inlined_call_operand.hbm [shape: bf16[2,2,128,128], index: 3, kind: input, shape index: {}]
  %s4 = inlined_call_operand.hbm [shape: f32[2,2,1,128], index: 4, kind: input, shape index: {}]
  %s5 = inlined_call_operand.vmem [shape: f32[2,2,1,128], index: 5, kind: input, shape index: {}]
  %s6 = inlined_call_operand.hbm [shape: bf16[2,128,256], index: 6, kind: input, shape index: {}]
  %s7 = inlined_call_operand.hbm [shape: f32[2,1,256], index: 7, kind: input, shape index: {}]
  %s8 = inlined_call_operand.hbm [shape: bf16[2,256,128], index: 8, kind: input, shape index: {}]
  %s9 = inlined_call_operand.vmem [shape: f32[2,1,128], index: 9, kind: input, shape index: {}]
  %s10 = inlined_call_operand.vmem [shape: f32[2,1,128], index: 10, kind: input, shape index: {}]
  %s11 = inlined_call_operand.vmem [shape: f32[2,1,128], index: 11, kind: input, shape index: {}]
  %s12 = inlined_call_operand.hbm [shape: f32[32,128], index: 12, kind: output, shape index: {}]
  %s13 = sld [smem:[#allocation0]]
  $region117: #{tpu_custom_call.1} parent=0
    _
  %s15 = ssub.s32 1, %s13
  %s16 = scalar_select 0, %s15, %s13
  $region1: #{tpu_custom_call.1} parent=0
    #allocation2 [shape = 'u8[16384]{0}', space=vmem, size = 0x4000, scoped, tag = 'input window, operand 0']
    #allocation3 [shape = 's32[2]{0}', space=sflag, size = 0x8, scoped, tag = 'scoped memory for tpu_custom_call.1']
    #allocation4 [shape = 's32[2]{0}', space=sflag, size = 0x8, scoped, tag = 'scoped memory for tpu_custom_call.1']
    #allocation5 [shape = 'u8[16384]{0}', space=vmem, size = 0x4000, scoped, tag = 'input window, operand 1']
    #allocation6 [shape = 's32[2]{0}', space=sflag, size = 0x8, scoped, tag = 'scoped memory for tpu_custom_call.1']
    #allocation7 [shape = 'u8[393216]{0}', space=vmem, size = 0x60000, scoped, tag = 'input window, operand 2']
    #allocation8 [shape = 'u8[131072]{0}', space=vmem, size = 0x20000, scoped, tag = 'input window, operand 3']
    #allocation9 [shape = 's32[2]{0}', space=sflag, size = 0x8, scoped, tag = 'scoped memory for tpu_custom_call.1']
    #allocation10 [shape = 'u8[2048]{0}', space=vmem, size = 0x800, scoped, tag = 'input window, operand 4']
    #allocation11 [shape = 'u8[131072]{0}', space=vmem, size = 0x20000, scoped, tag = 'input window, operand 6']
    #allocation12 [shape = 's32[2]{0}', space=sflag, size = 0x8, scoped, tag = 'scoped memory for tpu_custom_call.1']
    #allocation13 [shape = 'u8[2048]{0}', space=vmem, size = 0x800, scoped, tag = 'input window, operand 7']
    #allocation14 [shape = 'u8[131072]{0}', space=vmem, size = 0x20000, scoped, tag = 'input window, operand 8']
    #allocation15 [shape = 's32[2]{0}', space=sflag, size = 0x8, scoped, tag = 'scoped memory for tpu_custom_call.1']
    #allocation16 [shape = 'u8[16384]{0}', space=vmem, size = 0x4000, scoped, tag = 'output window, operand 0']
    %17 = vsyncpa [#allocation3], 0
    %s18 = scalar_lea.sflag [#allocation3], 1
    %19 = vsyncpa %s18, 0
    %20 = vsyncpa [#allocation6], 0
    %s21 = scalar_lea.sflag [#allocation6], 1
    %22 = vsyncpa %s21, 0
    %23 = vsyncpa [#allocation9], 0
    %s24 = scalar_lea.sflag [#allocation9], 1
    %25 = vsyncpa %s24, 0
    %26 = vsyncpa [#allocation12], 0
    %s27 = scalar_lea.sflag [#allocation12], 1
    %28 = vsyncpa %s27, 0
    %29 = vsyncpa [#allocation15], 0
    %s30 = scalar_lea.sflag [#allocation15], 1
    %31 = vsyncpa %s30, 0
    %32 = vsyncpa [#allocation4], 0
    %s33 = scalar_lea.sflag [#allocation4], 1
    %34 = vsyncpa %s33, 0
    loop: start=0, step=1, limit=6
    $region2: #{tpu_custom_call.1} parent=1 // loop_pre_header
      _
    $region3: #{tpu_custom_call.1} parent=1 // loop_header
      %s36 = sphi 0, %s40
      %p37 = scmp.ge.s32.totalorder %s36, 6
      %s43 = sphi 0, %s55
      %s44 = sphi 0, %s51
      %s45 = sphi 0, %s43
      %s46 = sphi 0, %s44
      %s47 = sphi 0, %s45
      %s48 = sphi 0, %s46
      %s58 = sphi 0, %s60
      %s61 = sphi 0, %s58
      %s62 = sphi 0, %s61
      %s78 = sphi 0, %s62
      %s84 = sphi 0, %s86
      %s87 = sphi 0, %s84
      %s88 = sphi 0, %s87
      %s104 = sphi 0, %s88
      %s110 = sphi 0, %s112
      %s113 = sphi 0, %s110
      %s114 = sphi 0, %s113
      %s130 = sphi 0, %s114
      %s136 = sphi 0, %s138
      %s139 = sphi 0, %s136
      %s140 = sphi 0, %s139
      %s156 = sphi 0, %s140
      %s162 = sphi 0, %s164
      %s165 = sphi 0, %s162
      %s166 = sphi 0, %s165
      %s182 = sphi 0, %s166
      %s188 = sphi 0, %s190
      %s191 = sphi 0, %s188
      %s192 = sphi 0, %s191
      %s208 = sphi 0, %s192
      %s214 = sphi 0, %s216
      %s217 = sphi 0, %s214
      %s218 = sphi 0, %s217
      %s234 = sphi 0, %s218
      %s240 = sphi 0, %s242
      %s243 = sphi 0, %s240
      %s244 = sphi 0, %s243
      %s260 = sphi 0, %s244
      %s266 = sphi 0, %s268
      %s269 = sphi 0, %s266
      %s270 = sphi 0, %s269
      %s286 = sphi 0, %s270
      %s292 = sphi 0, %s294
      %s295 = sphi 0, %s292
      %s296 = sphi 0, %s295
      %s312 = sphi 0, %s296
      %s318 = sphi 0, %s320
      %s321 = sphi 0, %s318
      %s322 = sphi 0, %s321
      %s338 = sphi 0, %s322
      %s344 = sphi 0, %s346
      %s347 = sphi 0, %s344
      %s348 = sphi 0, %s347
      %s364 = sphi 0, %s348
      %s370 = sphi 0, %s372
      %s373 = sphi 0, %s370
      %s374 = sphi 0, %s373
      %s390 = sphi 0, %s374
    $region4: #{tpu_custom_call.1} parent=1 // loop_header_branch
      %39 = sbr.rel (%p37) target = $region8
    $region5: #{tpu_custom_call.1} parent=1 // loop_body
      %s41 = ssub.s32 %s36, 1
      %s42 = ssub.s32 %s36, 2
      %s49 = sadd.s32 1, %s44
      %p50 = scmp.ge.s32.totalorder %s49, 2
      %s51 = scalar_select %p50, 0, %s49
      %s52 = sadd.s32 1, %s43
      %s53 = scalar_select %p50, %s52, %s43
      %p54 = scmp.ge.s32.totalorder %s53, 2
      %s55 = scalar_select %p54, 0, %s53
      %s56 = ssub.s32 %s43, %s55
      %p57 = scmp.eq.s32.totalorder %s56, 0
      %s59 = sadd.s32 %s58, 1
      %s60 = scalar_select %p57, %s58, %s59
      %p63 = pneg %p57
      %p64 = scmp.eq.s32.totalorder %s36, 3
      %p65 = por %p63, %p64
      %p66 = scmp.ne.s32.totalorder %s58, %s61
      %p67 = scmp.eq.s32.totalorder %s36, 0
      %p68 = por %p66, %p67
      %p69 = scmp.ne.s32.totalorder %s58, %s61
      %p70 = scmp.eq.s32.totalorder %s41, 3
      %p71 = por %p69, %p70
      %p72 = scmp.ne.s32.totalorder %s61, %s62
      %p73 = scmp.eq.s32.totalorder %s41, 0
      %p74 = por %p72, %p73
      %p75 = scmp.ne.s32.totalorder %s61, %s62
      %p76 = scmp.eq.s32.totalorder %s42, 3
      %p77 = por %p75, %p76
      %p79 = scmp.ne.s32.totalorder %s62, %s78
      %p80 = scmp.eq.s32.totalorder %s42, 0
      %p81 = por %p79, %p80
      %s82 = ssub.s32 %s43, %s55
      %p83 = scmp.eq.s32.totalorder %s82, 0
      %s85 = sadd.s32 %s84, 1
      %s86 = scalar_select %p83, %s84, %s85
      %p89 = pneg %p83
      %p90 = scmp.eq.s32.totalorder %s36, 3
      %p91 = por %p89, %p90
      %p92 = scmp.ne.s32.totalorder %s84, %s87
      %p93 = scmp.eq.s32.totalorder %s36, 0
      %p94 = por %p92, %p93
      %p95 = scmp.ne.s32.totalorder %s84, %s87
      %p96 = scmp.eq.s32.totalorder %s41, 3
      %p97 = por %p95, %p96
      %p98 = scmp.ne.s32.totalorder %s87, %s88
      %p99 = scmp.eq.s32.totalorder %s41, 0
      %p100 = por %p98, %p99
      %p101 = scmp.ne.s32.totalorder %s87, %s88
      %p102 = scmp.eq.s32.totalorder %s42, 3
      %p103 = por %p101, %p102
      %p105 = scmp.ne.s32.totalorder %s88, %s104
      %p106 = scmp.eq.s32.totalorder %s42, 0
      %p107 = por %p105, %p106
      %s108 = ssub.s32 %s44, %s51
      %p109 = scmp.eq.s32.totalorder %s108, 0
      %s111 = sadd.s32 %s110, 1
      %s112 = scalar_select %p109, %s110, %s111
      %p115 = pneg %p109
      %p116 = scmp.eq.s32.totalorder %s36, 3
      %p117 = por %p115, %p116
      %p118 = scmp.ne.s32.totalorder %s110, %s113
      %p119 = scmp.eq.s32.totalorder %s36, 0
      %p120 = por %p118, %p119
      %p121 = scmp.ne.s32.totalorder %s110, %s113
      %p122 = scmp.eq.s32.totalorder %s41, 3
      %p123 = por %p121, %p122
      %p124 = scmp.ne.s32.totalorder %s113, %s114
      %p125 = scmp.eq.s32.totalorder %s41, 0
      %p126 = por %p124, %p125
      %p127 = scmp.ne.s32.totalorder %s113, %s114
      %p128 = scmp.eq.s32.totalorder %s42, 3
      %p129 = por %p127, %p128
      %p131 = scmp.ne.s32.totalorder %s114, %s130
      %p132 = scmp.eq.s32.totalorder %s42, 0
      %p133 = por %p131, %p132
      %s134 = ssub.s32 %s44, %s51
      %p135 = scmp.eq.s32.totalorder %s134, 0
      %s137 = sadd.s32 %s136, 1
      %s138 = scalar_select %p135, %s136, %s137
      %p141 = pneg %p135
      %p142 = scmp.eq.s32.totalorder %s36, 3
      %p143 = por %p141, %p142
      %p144 = scmp.ne.s32.totalorder %s136, %s139
      %p145 = scmp.eq.s32.totalorder %s36, 0
      %p146 = por %p144, %p145
      %p147 = scmp.ne.s32.totalorder %s136, %s139
      %p148 = scmp.eq.s32.totalorder %s41, 3
      %p149 = por %p147, %p148
      %p150 = scmp.ne.s32.totalorder %s139, %s140
      %p151 = scmp.eq.s32.totalorder %s41, 0
      %p152 = por %p150, %p151
      %p153 = scmp.ne.s32.totalorder %s139, %s140
      %p154 = scmp.eq.s32.totalorder %s42, 3
      %p155 = por %p153, %p154
      %p157 = scmp.ne.s32.totalorder %s140, %s156
      %p158 = scmp.eq.s32.totalorder %s42, 0
      %p159 = por %p157, %p158
      %s160 = ssub.s32 %s44, %s51
      %p161 = scmp.eq.s32.totalorder %s160, 0
      %s163 = sadd.s32 %s162, 1
      %s164 = scalar_select %p161, %s162, %s163
      %p167 = pneg %p161
      %p168 = scmp.eq.s32.totalorder %s36, 3
      %p169 = por %p167, %p168
      %p170 = scmp.ne.s32.totalorder %s162, %s165
      %p171 = scmp.eq.s32.totalorder %s36, 0
      %p172 = por %p170, %p171
      %p173 = scmp.ne.s32.totalorder %s162, %s165
      %p174 = scmp.eq.s32.totalorder %s41, 3
      %p175 = por %p173, %p174
      %p176 = scmp.ne.s32.totalorder %s165, %s166
      %p177 = scmp.eq.s32.totalorder %s41, 0
      %p178 = por %p176, %p177
      %p179 = scmp.ne.s32.totalorder %s165, %s166
      %p180 = scmp.eq.s32.totalorder %s42, 3
      %p181 = por %p179, %p180
      %p183 = scmp.ne.s32.totalorder %s166, %s182
      %p184 = scmp.eq.s32.totalorder %s42, 0
      %p185 = por %p183, %p184
      %s186 = ssub.s32 %s44, %s51
      %p187 = scmp.eq.s32.totalorder %s186, 0
      %s189 = sadd.s32 %s188, 1
      %s190 = scalar_select %p187, %s188, %s189
      %p193 = pneg %p187
      %p194 = scmp.eq.s32.totalorder %s36, 3
      %p195 = por %p193, %p194
      %p196 = scmp.ne.s32.totalorder %s188, %s191
      %p197 = scmp.eq.s32.totalorder %s36, 0
      %p198 = por %p196, %p197
      %p199 = scmp.ne.s32.totalorder %s188, %s191
      %p200 = scmp.eq.s32.totalorder %s41, 3
      %p201 = por %p199, %p200
      %p202 = scmp.ne.s32.totalorder %s191, %s192
      %p203 = scmp.eq.s32.totalorder %s41, 0
      %p204 = por %p202, %p203
      %p205 = scmp.ne.s32.totalorder %s191, %s192
      %p206 = scmp.eq.s32.totalorder %s42, 3
      %p207 = por %p205, %p206
      %p209 = scmp.ne.s32.totalorder %s192, %s208
      %p210 = scmp.eq.s32.totalorder %s42, 0
      %p211 = por %p209, %p210
      %s212 = ssub.s32 %s44, %s51
      %p213 = scmp.eq.s32.totalorder %s212, 0
      %s215 = sadd.s32 %s214, 1
      %s216 = scalar_select %p213, %s214, %s215
      %p219 = pneg %p213
      %p220 = scmp.eq.s32.totalorder %s36, 3
      %p221 = por %p219, %p220
      %p222 = scmp.ne.s32.totalorder %s214, %s217
      %p223 = scmp.eq.s32.totalorder %s36, 0
      %p224 = por %p222, %p223
      %p225 = scmp.ne.s32.totalorder %s214, %s217
      %p226 = scmp.eq.s32.totalorder %s41, 3
      %p227 = por %p225, %p226
      %p228 = scmp.ne.s32.totalorder %s217, %s218
      %p229 = scmp.eq.s32.totalorder %s41, 0
      %p230 = por %p228, %p229
      %p231 = scmp.ne.s32.totalorder %s217, %s218
      %p232 = scmp.eq.s32.totalorder %s42, 3
      %p233 = por %p231, %p232
      %p235 = scmp.ne.s32.totalorder %s218, %s234
      %p236 = scmp.eq.s32.totalorder %s42, 0
      %p237 = por %p235, %p236
      %s238 = ssub.s32 %s44, %s51
      %p239 = scmp.eq.s32.totalorder %s238, 0
      %s241 = sadd.s32 %s240, 1
      %s242 = scalar_select %p239, %s240, %s241
      %p245 = pneg %p239
      %p246 = scmp.eq.s32.totalorder %s36, 3
      %p247 = por %p245, %p246
      %p248 = scmp.ne.s32.totalorder %s240, %s243
      %p249 = scmp.eq.s32.totalorder %s36, 0
      %p250 = por %p248, %p249
      %p251 = scmp.ne.s32.totalorder %s240, %s243
      %p252 = scmp.eq.s32.totalorder %s41, 3
      %p253 = por %p251, %p252
      %p254 = scmp.ne.s32.totalorder %s243, %s244
      %p255 = scmp.eq.s32.totalorder %s41, 0
      %p256 = por %p254, %p255
      %p257 = scmp.ne.s32.totalorder %s243, %s244
      %p258 = scmp.eq.s32.totalorder %s42, 3
      %p259 = por %p257, %p258
      %p261 = scmp.ne.s32.totalorder %s244, %s260
      %p262 = scmp.eq.s32.totalorder %s42, 0
      %p263 = por %p261, %p262
      %s264 = ssub.s32 %s44, %s51
      %p265 = scmp.eq.s32.totalorder %s264, 0
      %s267 = sadd.s32 %s266, 1
      %s268 = scalar_select %p265, %s266, %s267
      %p271 = pneg %p265
      %p272 = scmp.eq.s32.totalorder %s36, 3
      %p273 = por %p271, %p272
      %p274 = scmp.ne.s32.totalorder %s266, %s269
      %p275 = scmp.eq.s32.totalorder %s36, 0
      %p276 = por %p274, %p275
      %p277 = scmp.ne.s32.totalorder %s266, %s269
      %p278 = scmp.eq.s32.totalorder %s41, 3
      %p279 = por %p277, %p278
      %p280 = scmp.ne.s32.totalorder %s269, %s270
      %p281 = scmp.eq.s32.totalorder %s41, 0
      %p282 = por %p280, %p281
      %p283 = scmp.ne.s32.totalorder %s269, %s270
      %p284 = scmp.eq.s32.totalorder %s42, 3
      %p285 = por %p283, %p284
      %p287 = scmp.ne.s32.totalorder %s270, %s286
      %p288 = scmp.eq.s32.totalorder %s42, 0
      %p289 = por %p287, %p288
      %s290 = ssub.s32 %s44, %s51
      %p291 = scmp.eq.s32.totalorder %s290, 0
      %s293 = sadd.s32 %s292, 1
      %s294 = scalar_select %p291, %s292, %s293
      %p297 = pneg %p291
      %p298 = scmp.eq.s32.totalorder %s36, 3
      %p299 = por %p297, %p298
      %p300 = scmp.ne.s32.totalorder %s292, %s295
      %p301 = scmp.eq.s32.totalorder %s36, 0
      %p302 = por %p300, %p301
      %p303 = scmp.ne.s32.totalorder %s292, %s295
      %p304 = scmp.eq.s32.totalorder %s41, 3
      %p305 = por %p303, %p304
      %p306 = scmp.ne.s32.totalorder %s295, %s296
      %p307 = scmp.eq.s32.totalorder %s41, 0
      %p308 = por %p306, %p307
      %p309 = scmp.ne.s32.totalorder %s295, %s296
      %p310 = scmp.eq.s32.totalorder %s42, 3
      %p311 = por %p309, %p310
      %p313 = scmp.ne.s32.totalorder %s296, %s312
      %p314 = scmp.eq.s32.totalorder %s42, 0
      %p315 = por %p313, %p314
      %s316 = ssub.s32 %s44, %s51
      %p317 = scmp.eq.s32.totalorder %s316, 0
      %s319 = sadd.s32 %s318, 1
      %s320 = scalar_select %p317, %s318, %s319
      %p323 = pneg %p317
      %p324 = scmp.eq.s32.totalorder %s36, 3
      %p325 = por %p323, %p324
      %p326 = scmp.ne.s32.totalorder %s318, %s321
      %p327 = scmp.eq.s32.totalorder %s36, 0
      %p328 = por %p326, %p327
      %p329 = scmp.ne.s32.totalorder %s318, %s321
      %p330 = scmp.eq.s32.totalorder %s41, 3
      %p331 = por %p329, %p330
      %p332 = scmp.ne.s32.totalorder %s321, %s322
      %p333 = scmp.eq.s32.totalorder %s41, 0
      %p334 = por %p332, %p333
      %p335 = scmp.ne.s32.totalorder %s321, %s322
      %p336 = scmp.eq.s32.totalorder %s42, 3
      %p337 = por %p335, %p336
      %p339 = scmp.ne.s32.totalorder %s322, %s338
      %p340 = scmp.eq.s32.totalorder %s42, 0
      %p341 = por %p339, %p340
      %s342 = ssub.s32 %s44, %s51
      %p343 = scmp.eq.s32.totalorder %s342, 0
      %s345 = sadd.s32 %s344, 1
      %s346 = scalar_select %p343, %s344, %s345
      %p349 = pneg %p343
      %p350 = scmp.eq.s32.totalorder %s36, 3
      %p351 = por %p349, %p350
      %p352 = scmp.ne.s32.totalorder %s344, %s347
      %p353 = scmp.eq.s32.totalorder %s36, 0
      %p354 = por %p352, %p353
      %p355 = scmp.ne.s32.totalorder %s344, %s347
      %p356 = scmp.eq.s32.totalorder %s41, 3
      %p357 = por %p355, %p356
      %p358 = scmp.ne.s32.totalorder %s347, %s348
      %p359 = scmp.eq.s32.totalorder %s41, 0
      %p360 = por %p358, %p359
      %p361 = scmp.ne.s32.totalorder %s347, %s348
      %p362 = scmp.eq.s32.totalorder %s42, 3
      %p363 = por %p361, %p362
      %p365 = scmp.ne.s32.totalorder %s348, %s364
      %p366 = scmp.eq.s32.totalorder %s42, 0
      %p367 = por %p365, %p366
      %s368 = ssub.s32 %s43, %s55
      %p369 = scmp.eq.s32.totalorder %s368, 0
      %s371 = sadd.s32 %s370, 1
      %s372 = scalar_select %p369, %s370, %s371
      %p375 = pneg %p369
      %p376 = scmp.eq.s32.totalorder %s36, 3
      %p377 = por %p375, %p376
      %p378 = scmp.ne.s32.totalorder %s370, %s373
      %p379 = scmp.eq.s32.totalorder %s36, 0
      %p380 = por %p378, %p379
      %p381 = scmp.ne.s32.totalorder %s370, %s373
      %p382 = scmp.eq.s32.totalorder %s41, 3
      %p383 = por %p381, %p382
      %p384 = scmp.ne.s32.totalorder %s373, %s374
      %p385 = scmp.eq.s32.totalorder %s41, 0
      %p386 = por %p384, %p385
      %p387 = scmp.ne.s32.totalorder %s373, %s374
      %p388 = scmp.eq.s32.totalorder %s42, 3
      %p389 = por %p387, %p388
      %p391 = scmp.ne.s32.totalorder %s374, %s390
      %p392 = scmp.eq.s32.totalorder %s42, 0
      %p393 = por %p391, %p392
      %p394 = scmp.le.s32.totalorder 1, %s36
      %p395 = scmp.lt.s32.totalorder %s36, 5
      %p396 = pnand %p394, %p395
      %p397 = pneg %p396
      // Predicated region
      $region9: #{tpu_custom_call.1} parent=5 // pred_check
        _
      $region10: #{tpu_custom_call.1} parent=5 // pred_check_branch
        %399 = sbr.rel (%p396) target = $region12
      $region11: #{tpu_custom_call.1} parent=5 // pred_region
        %s400 = ssub.s32 %s36, 1
      $region12: #{tpu_custom_call.1} parent=5 // pred_fallthru
        _
      %p401 = scmp.lt.s32.totalorder %s36, 4
      // Predicated region
      $region13: #{tpu_custom_call.1} parent=5 // pred_check
        %p402 = pneg %p401
      $region14: #{tpu_custom_call.1} parent=5 // pred_check_branch
        %404 = sbr.rel (%p402) target = $region16
      $region15: #{tpu_custom_call.1} parent=5 // pred_region
        // Predicated region
        $region17: #{tpu_custom_call.1} parent=15 // pred_check
          %p405 = pneg %p68
        $region18: #{tpu_custom_call.1} parent=15 // pred_check_branch
          %407 = sbr.rel (%p405) target = $region20
        $region19: #{tpu_custom_call.1} parent=15 // pred_region
          %s408 = sand.u32 %s58, 1
          %s409 = scalar_lea.sflag [#allocation3], %s408
          %s410 = sand.u32 %s58, 1
          %s411 = smul.addr %s410, 16
          %s412 = scalar_lea.vmem [#allocation2], %s411
          %s413 = smul.u32 2, %s43
          %415 = vsyncadd %s409, 0
          %s416 = smul.addr %s413, 8
          %s417 = scalar_lea.hbm %s0, %s416
          %s418 = sshll.u32 %s417, 4
          %s419 = int_to_ptr.hbm [resolvable:$true] %s418
          %s420 = sshll.u32 %s412, 4
          %s421 = int_to_ptr.vmem [resolvable:$true] %s420
          %426 = dma.hbm_to_vmem [thread:$0]  %s419, 256, %s421, %s409, 128, 128, 8
        $region20: #{tpu_custom_call.1} parent=15 // pred_fallthru
          _
        // Predicated region
        $region21: #{tpu_custom_call.1} parent=15 // pred_check
          %p427 = pneg %p94
        $region22: #{tpu_custom_call.1} parent=15 // pred_check_branch
          %429 = sbr.rel (%p427) target = $region24
        $region23: #{tpu_custom_call.1} parent=15 // pred_region
          #allocation18 [shape = 'u32[6]{0}', space=smem, size = 0x18, scoped, tag = 'DMA stride descriptor']
          %s430 = sand.u32 %s36, 1
          %s431 = scalar_lea.sflag [#allocation6], %s430
          %s432 = sand.u32 %s84, 1
          %s433 = smul.addr %s432, 16
          %s434 = scalar_lea.vmem [#allocation5], %s433
          %436 = vsyncadd %s431, 0
          %s437 = smul.addr %s43, 2
          %s438 = smul.addr %s437, 4
          %s439 = scalar_lea.hbm %s1, %s438
          %s441 = sshll.u32 1, 14
          %s442 = sxor.u32 4294967295, %s441
          %s444 = sld [smem:[#allocation0]]
          %s445 = sadd.s32 2, %s444
          %s447 = sshll.u32 7, 26
          %s448 = sxor.u32 4294967295, %s447
          %s449 = sand.u32 0, %s448
          %s450 = sshll.u32 %s445, 26
          %s451 = sor.u32 %s449, %s450
          %s452 = sshll.u32 %s439, 4
          %s453 = int_to_ptr.hbm [resolvable:$true] %s452
          %s454 = sshll.u32 %s434, 4
          %s455 = int_to_ptr.vmem [resolvable:$true] %s454
          %461 = sst [smem:[#allocation18]] 256
          %s462 = scalar_lea.smem [#allocation18], 1
          %463 = sst [smem:[%s462]] 128
          %s464 = scalar_lea.smem [#allocation18], 2
          %465 = sst [smem:[%s464]] 2
          %s466 = scalar_lea.smem [#allocation18], 3
          %467 = sst [smem:[%s466]] 64
          %s468 = scalar_lea.smem [#allocation18], 4
          %469 = sst [smem:[%s468]] 64
          %s470 = scalar_lea.smem [#allocation18], 5
          %471 = sst [smem:[%s470]] 4
          %473 = dma.general %s453, 256, %s455, %s431, [#allocation17], [#allocation18], %s451, 0
        $region24: #{tpu_custom_call.1} parent=15 // pred_fallthru
          _
        // Predicated region
        $region25: #{tpu_custom_call.1} parent=15 // pred_check
          %p474 = pneg %p120
        $region26: #{tpu_custom_call.1} parent=15 // pred_check_branch
          %476 = sbr.rel (%p474) target = $region28
        $region27: #{tpu_custom_call.1} parent=15 // pred_region
          %s477 = sand.u32 %s36, 1
          %s478 = scalar_lea.sflag [#allocation6], %s477
          %s479 = sand.u32 %s110, 1
          %s480 = smul.addr %s479, 384
          %s481 = scalar_lea.vmem [#allocation7], %s480
          %483 = vsyncadd %s478, 0
          %s484 = smul.addr %s44, 96
          %s485 = smul.addr %s484, 4
          %s486 = scalar_lea.hbm %s2, %s485
          %s487 = sshll.u32 %s486, 4
          %s488 = int_to_ptr.hbm [resolvable:$true] %s487
          %s489 = sshll.u32 %s481, 4
          %s490 = int_to_ptr.vmem [resolvable:$true] %s489
          %495 = dma.hbm_to_vmem [thread:$0]  %s488, 6144, %s490, %s478, 192, 192, 12
        $region28: #{tpu_custom_call.1} parent=15 // pred_fallthru
          _
        // Predicated region
        $region29: #{tpu_custom_call.1} parent=15 // pred_check
          %p496 = pneg %p146
        $region30: #{tpu_custom_call.1} parent=15 // pred_check_branch
          %498 = sbr.rel (%p496) target = $region32
        $region31: #{tpu_custom_call.1} parent=15 // pred_region
          %s499 = sand.u32 %s36, 1
          %s500 = scalar_lea.sflag [#allocation9], %s499
          %s501 = sand.u32 %s136, 1
          %s502 = smul.addr %s501, 128
          %s503 = scalar_lea.vmem [#allocation8], %s502
          %505 = vsyncadd %s500, 0
          %s506 = smul.addr %s44, 32
          %s507 = smul.addr %s506, 4
          %s508 = scalar_lea.hbm %s3, %s507
          %s509 = sshll.u32 %s508, 4
          %s510 = int_to_ptr.hbm [resolvable:$true] %s509
          %s511 = sshll.u32 %s503, 4
          %s512 = int_to_ptr.vmem [resolvable:$true] %s511
          %517 = dma.hbm_to_vmem [thread:$0]  %s510, 2048, %s512, %s500, 64, 64, 4
        $region32: #{tpu_custom_call.1} parent=15 // pred_fallthru
          _
        // Predicated region
        $region33: #{tpu_custom_call.1} parent=15 // pred_check
          %p518 = pneg %p172
        $region34: #{tpu_custom_call.1} parent=15 // pred_check_branch
          %520 = sbr.rel (%p518) target = $region36
        $region35: #{tpu_custom_call.1} parent=15 // pred_region
          %s521 = sand.u32 %s36, 1
          %s522 = scalar_lea.sflag [#allocation9], %s521
          %s523 = sand.u32 %s162, 1
          %s524 = smul.addr %s523, 2
          %s525 = scalar_lea.vmem [#allocation10], %s524
          %527 = vsyncadd %s522, 0
          %s528 = smul.addr %s44, 2
          %s529 = scalar_lea.hbm %s4, %s528
          %s530 = sshll.u32 %s529, 4
          %s531 = int_to_ptr.hbm [resolvable:$true] %s530
          %s532 = sshll.u32 %s525, 4
          %s533 = int_to_ptr.vmem [resolvable:$true] %s532
          %538 = dma.hbm_to_vmem [thread:$0]  %s531, 32, %s533, %s522, 16, 16, 1
        $region36: #{tpu_custom_call.1} parent=15 // pred_fallthru
          _
        // Predicated region
        $region37: #{tpu_custom_call.1} parent=15 // pred_check
          %p539 = pneg %p198
        $region38: #{tpu_custom_call.1} parent=15 // pred_check_branch
          %541 = sbr.rel (%p539) target = $region40
        $region39: #{tpu_custom_call.1} parent=15 // pred_region
          %p542 = scmp.lt.s32.totalorder %s44, 1
          %s543 = scalar_select %p542, %s44, 1
          %s544 = smul.addr %s543, 2
          %s545 = scalar_lea.vmem %s5, %s544
        $region40: #{tpu_custom_call.1} parent=15 // pred_fallthru
          _
        // Predicated region
        $region41: #{tpu_custom_call.1} parent=15 // pred_check
          %p546 = pneg %p224
        $region42: #{tpu_custom_call.1} parent=15 // pred_check_branch
          %548 = sbr.rel (%p546) target = $region44
        $region43: #{tpu_custom_call.1} parent=15 // pred_region
          %s549 = sand.u32 %s36, 1
          %s550 = scalar_lea.sflag [#allocation12], %s549
          %s551 = sand.u32 %s214, 1
          %s552 = smul.addr %s551, 128
          %s553 = scalar_lea.vmem [#allocation11], %s552
          %555 = vsyncadd %s550, 0
          %s556 = smul.addr %s44, 32
          %s557 = smul.addr %s556, 4
          %s558 = scalar_lea.hbm %s6, %s557
          %s559 = sshll.u32 %s558, 4
          %s560 = int_to_ptr.hbm [resolvable:$true] %s559
          %s561 = sshll.u32 %s553, 4
          %s562 = int_to_ptr.vmem [resolvable:$true] %s561
          %567 = dma.hbm_to_vmem [thread:$0]  %s560, 2048, %s562, %s550, 128, 128, 8
        $region44: #{tpu_custom_call.1} parent=15 // pred_fallthru
          _
        // Predicated region
        $region45: #{tpu_custom_call.1} parent=15 // pred_check
          %p568 = pneg %p250
        $region46: #{tpu_custom_call.1} parent=15 // pred_check_branch
          %570 = sbr.rel (%p568) target = $region48
        $region47: #{tpu_custom_call.1} parent=15 // pred_region
          %s571 = sand.u32 %s36, 1
          %s572 = scalar_lea.sflag [#allocation12], %s571
          %s573 = sand.u32 %s240, 1
          %s574 = smul.addr %s573, 2
          %s575 = scalar_lea.vmem [#allocation13], %s574
          %577 = vsyncadd %s572, 0
          %s578 = smul.addr %s44, 2
          %s579 = scalar_lea.hbm %s7, %s578
          %s581 = sshll.u32 %s579, 4
          %s582 = int_to_ptr.hbm [resolvable:$true] %s581
          %s583 = sshll.u32 %s575, 4
          %s584 = int_to_ptr.vmem [resolvable:$true] %s583
          %586 = dma.hbm_to_vmem [thread:$0]  %s582, 32, %s584, %s572
        $region48: #{tpu_custom_call.1} parent=15 // pred_fallthru
          _
        // Predicated region
        $region49: #{tpu_custom_call.1} parent=15 // pred_check
          %p587 = pneg %p276
        $region50: #{tpu_custom_call.1} parent=15 // pred_check_branch
          %589 = sbr.rel (%p587) target = $region52
        $region51: #{tpu_custom_call.1} parent=15 // pred_region
          %s590 = sand.u32 %s266, 1
          %s591 = scalar_lea.sflag [#allocation15], %s590
          %s592 = sand.u32 %s266, 1
          %s593 = smul.addr %s592, 128
          %s594 = scalar_lea.vmem [#allocation14], %s593
          %596 = vsyncadd %s591, 0
          %s597 = smul.addr %s44, 32
          %s598 = smul.addr %s597, 4
          %s599 = scalar_lea.hbm %s8, %s598
          %s600 = sshll.u32 %s599, 4
          %s601 = int_to_ptr.hbm [resolvable:$true] %s600
          %s602 = sshll.u32 %s594, 4
          %s603 = int_to_ptr.vmem [resolvable:$true] %s602
          %608 = dma.hbm_to_vmem [thread:$0]  %s601, 2048, %s603, %s591, 64, 64, 4
        $region52: #{tpu_custom_call.1} parent=15 // pred_fallthru
          _
        // Predicated region
        $region53: #{tpu_custom_call.1} parent=15 // pred_check
          %p609 = pneg %p302
        $region54: #{tpu_custom_call.1} parent=15 // pred_check_branch
          %611 = sbr.rel (%p609) target = $region56
        $region55: #{tpu_custom_call.1} parent=15 // pred_region
          %p612 = scmp.lt.s32.totalorder %s44, 1
          %s613 = scalar_select %p612, %s44, 1
          %s614 = scalar_lea.vmem %s9, %s613
        $region56: #{tpu_custom_call.1} parent=15 // pred_fallthru
          _
        // Predicated region
        $region57: #{tpu_custom_call.1} parent=15 // pred_check
          %p615 = pneg %p328
        $region58: #{tpu_custom_call.1} parent=15 // pred_check_branch
          %617 = sbr.rel (%p615) target = $region60
        $region59: #{tpu_custom_call.1} parent=15 // pred_region
          %p618 = scmp.lt.s32.totalorder %s44, 1
          %s619 = scalar_select %p618, %s44, 1
          %s620 = scalar_lea.vmem %s10, %s619
        $region60: #{tpu_custom_call.1} parent=15 // pred_fallthru
          _
        // Predicated region
        $region61: #{tpu_custom_call.1} parent=15 // pred_check
          %p621 = pneg %p354
        $region62: #{tpu_custom_call.1} parent=15 // pred_check_branch
          %623 = sbr.rel (%p621) target = $region64
        $region63: #{tpu_custom_call.1} parent=15 // pred_region
          %p624 = scmp.lt.s32.totalorder %s44, 1
          %s625 = scalar_select %p624, %s44, 1
          %s626 = scalar_lea.vmem %s11, %s625
        $region64: #{tpu_custom_call.1} parent=15 // pred_fallthru
          _
      $region16: #{tpu_custom_call.1} parent=5 // pred_fallthru
        _
      %p627 = scmp.le.s32.totalorder 1, %s36
      %p628 = scmp.lt.s32.totalorder %s36, 5
      %p629 = pnand %p627, %p628
      %p630 = pneg %p629
      // Predicated region
      $region65: #{tpu_custom_call.1} parent=5 // pred_check
        _
      $region66: #{tpu_custom_call.1} parent=5 // pred_check_branch
        %632 = sbr.rel (%p629) target = $region68
      $region67: #{tpu_custom_call.1} parent=5 // pred_region
        %s633 = ssub.s32 %s36, 1
        %s634 = sand.u32 %s61, 1
        %s635 = scalar_lea.sflag [#allocation3], %s634
        %s636 = sand.u32 %s61, 1
        %s637 = smul.addr %s636, 16
        %s638 = scalar_lea.vmem [#allocation2], %s637
        // Predicated region
        $region69: #{tpu_custom_call.1} parent=67 // pred_check
          %p639 = pneg %p74
        $region70: #{tpu_custom_call.1} parent=67 // pred_check_branch
          %641 = sbr.rel (%p639) target = $region72
        $region71: #{tpu_custom_call.1} parent=67 // pred_region
          %643 = dma.done %s635, 256
        $region72: #{tpu_custom_call.1} parent=67 // pred_fallthru
          _
        %s644 = sand.u32 %s41, 1
        %s645 = scalar_lea.sflag [#allocation6], %s644
        %s646 = sand.u32 %s87, 1
        %s647 = smul.addr %s646, 16
        %s648 = scalar_lea.vmem [#allocation5], %s647
        // Predicated region
        $region73: #{tpu_custom_call.1} parent=67 // pred_check
          %p649 = pneg %p100
        $region74: #{tpu_custom_call.1} parent=67 // pred_check_branch
          %651 = sbr.rel (%p649) target = $region76
        $region75: #{tpu_custom_call.1} parent=67 // pred_region
          %653 = dma.done %s645, 256
        $region76: #{tpu_custom_call.1} parent=67 // pred_fallthru
          _
        %s654 = sand.u32 %s41, 1
        %s655 = scalar_lea.sflag [#allocation6], %s654
        %s656 = sand.u32 %s113, 1
        %s657 = smul.addr %s656, 384
        %s658 = scalar_lea.vmem [#allocation7], %s657
        // Predicated region
        $region77: #{tpu_custom_call.1} parent=67 // pred_check
          %p659 = pneg %p126
        $region78: #{tpu_custom_call.1} parent=67 // pred_check_branch
          %661 = sbr.rel (%p659) target = $region80
        $region79: #{tpu_custom_call.1} parent=67 // pred_region
          %663 = dma.done %s655, 6144
        $region80: #{tpu_custom_call.1} parent=67 // pred_fallthru
          _
        %s664 = sand.u32 %s41, 1
        %s665 = scalar_lea.sflag [#allocation9], %s664
        %s666 = sand.u32 %s139, 1
        %s667 = smul.addr %s666, 128
        %s668 = scalar_lea.vmem [#allocation8], %s667
        // Predicated region
        $region81: #{tpu_custom_call.1} parent=67 // pred_check
          %p669 = pneg %p152
        $region82: #{tpu_custom_call.1} parent=67 // pred_check_branch
          %671 = sbr.rel (%p669) target = $region84
        $region83: #{tpu_custom_call.1} parent=67 // pred_region
          %673 = dma.done %s665, 2048
        $region84: #{tpu_custom_call.1} parent=67 // pred_fallthru
          _
        %s674 = sand.u32 %s41, 1
        %s675 = scalar_lea.sflag [#allocation9], %s674
        %s676 = sand.u32 %s165, 1
        %s677 = smul.addr %s676, 2
        %s678 = scalar_lea.vmem [#allocation10], %s677
        // Predicated region
        $region85: #{tpu_custom_call.1} parent=67 // pred_check
          %p679 = pneg %p178
        $region86: #{tpu_custom_call.1} parent=67 // pred_check_branch
          %681 = sbr.rel (%p679) target = $region88
        $region87: #{tpu_custom_call.1} parent=67 // pred_region
          %683 = dma.done %s675, 32
        $region88: #{tpu_custom_call.1} parent=67 // pred_fallthru
          _
        %s684 = sand.u32 %s41, 1
        %s685 = scalar_lea.sflag [#allocation12], %s684
        %s686 = sand.u32 %s217, 1
        %s687 = smul.addr %s686, 128
        %s688 = scalar_lea.vmem [#allocation11], %s687
        // Predicated region
        $region89: #{tpu_custom_call.1} parent=67 // pred_check
          %p689 = pneg %p230
        $region90: #{tpu_custom_call.1} parent=67 // pred_check_branch
          %691 = sbr.rel (%p689) target = $region92
        $region91: #{tpu_custom_call.1} parent=67 // pred_region
          %693 = dma.done %s685, 2048
        $region92: #{tpu_custom_call.1} parent=67 // pred_fallthru
          _
        %s694 = sand.u32 %s41, 1
        %s695 = scalar_lea.sflag [#allocation12], %s694
        %s696 = sand.u32 %s243, 1
        %s697 = smul.addr %s696, 2
        %s698 = scalar_lea.vmem [#allocation13], %s697
        // Predicated region
        $region93: #{tpu_custom_call.1} parent=67 // pred_check
          %p699 = pneg %p256
        $region94: #{tpu_custom_call.1} parent=67 // pred_check_branch
          %701 = sbr.rel (%p699) target = $region96
        $region95: #{tpu_custom_call.1} parent=67 // pred_region
          %703 = dma.done %s695, 32
        $region96: #{tpu_custom_call.1} parent=67 // pred_fallthru
          _
        %s704 = sand.u32 %s269, 1
        %s705 = scalar_lea.sflag [#allocation15], %s704
        %s706 = sand.u32 %s269, 1
        %s707 = smul.addr %s706, 128
        %s708 = scalar_lea.vmem [#allocation14], %s707
        // Predicated region
        $region97: #{tpu_custom_call.1} parent=67 // pred_check
          %p709 = pneg %p282
        $region98: #{tpu_custom_call.1} parent=67 // pred_check_branch
          %711 = sbr.rel (%p709) target = $region100
        $region99: #{tpu_custom_call.1} parent=67 // pred_region
          %713 = dma.done %s705, 2048
        $region100: #{tpu_custom_call.1} parent=67 // pred_fallthru
          _
        %s714 = sand.u32 %s61, 1
        %s715 = scalar_lea.sflag [#allocation3], %s714
        %s716 = sand.u32 %s61, 1
        %s717 = smul.addr %s716, 16
        %s718 = scalar_lea.vmem [#allocation2], %s717
        %p719 = pneg %p74
        %p720 = pneg %p71
        %s721 = sand.u32 %s41, 1
        %s722 = scalar_lea.sflag [#allocation6], %s721
        %s723 = sand.u32 %s87, 1
        %s724 = smul.addr %s723, 16
        %s725 = scalar_lea.vmem [#allocation5], %s724
        %p726 = pneg %p100
        %p727 = pneg %p97
        %s728 = sand.u32 %s41, 1
        %s729 = scalar_lea.sflag [#allocation6], %s728
        %s730 = sand.u32 %s113, 1
        %s731 = smul.addr %s730, 384
        %s732 = scalar_lea.vmem [#allocation7], %s731
        %p733 = pneg %p126
        %p734 = pneg %p123
        %s735 = sand.u32 %s41, 1
        %s736 = scalar_lea.sflag [#allocation9], %s735
        %s737 = sand.u32 %s139, 1
        %s738 = smul.addr %s737, 128
        %s739 = scalar_lea.vmem [#allocation8], %s738
        %p740 = pneg %p152
        %p741 = pneg %p149
        %s742 = sand.u32 %s41, 1
        %s743 = scalar_lea.sflag [#allocation9], %s742
        %s744 = sand.u32 %s165, 1
        %s745 = smul.addr %s744, 2
        %s746 = scalar_lea.vmem [#allocation10], %s745
        %p747 = pneg %p178
        %p748 = pneg %p175
        %p749 = scmp.lt.s32.totalorder %s46, 1
        %s750 = scalar_select %p749, %s46, 1
        %s751 = smul.addr %s750, 2
        %s752 = scalar_lea.vmem %s5, %s751
        %p753 = pneg %p204
        %p754 = pneg %p201
        %s755 = sand.u32 %s41, 1
        %s756 = scalar_lea.sflag [#allocation12], %s755
        %s757 = sand.u32 %s217, 1
        %s758 = smul.addr %s757, 128
        %s759 = scalar_lea.vmem [#allocation11], %s758
        %p760 = pneg %p230
        %p761 = pneg %p227
        %s762 = sand.u32 %s41, 1
        %s763 = scalar_lea.sflag [#allocation12], %s762
        %s764 = sand.u32 %s243, 1
        %s765 = smul.addr %s764, 2
        %s766 = scalar_lea.vmem [#allocation13], %s765
        %p767 = pneg %p256
        %p768 = pneg %p253
        %s769 = sand.u32 %s269, 1
        %s770 = scalar_lea.sflag [#allocation15], %s769
        %s771 = sand.u32 %s269, 1
        %s772 = smul.addr %s771, 128
        %s773 = scalar_lea.vmem [#allocation14], %s772
        %p774 = pneg %p282
        %p775 = pneg %p279
        %p776 = scmp.lt.s32.totalorder %s46, 1
        %s777 = scalar_select %p776, %s46, 1
        %s778 = scalar_lea.vmem %s9, %s777
        %p779 = pneg %p308
        %p780 = pneg %p305
        %p781 = scmp.lt.s32.totalorder %s46, 1
        %s782 = scalar_select %p781, %s46, 1
        %s783 = scalar_lea.vmem %s10, %s782
        %p784 = pneg %p334
        %p785 = pneg %p331
        %p786 = scmp.lt.s32.totalorder %s46, 1
        %s787 = scalar_select %p786, %s46, 1
        %s788 = scalar_lea.vmem %s11, %s787
        %p789 = pneg %p360
        %p790 = pneg %p357
        %p791 = pneg %p386
        %p792 = pneg %p383
        %s793 = sand.u32 %s373, 1
        %s794 = scalar_lea.sflag [#allocation4], %s793
        %s795 = sand.u32 %s373, 1
        %s796 = smul.addr %s795, 16
        %s797 = scalar_lea.vmem [#allocation16], %s796
        %s798 = smul.u32 2, %s45
        %p799 = scmp.lt.s32.totalorder %s46, 1
        %s800 = scalar_select %p799, %s46, 1
        %s801 = smul.addr %s800, 2
        %s802 = scalar_lea.vmem %s5, %s801
        %p803 = scmp.lt.s32.totalorder %s46, 1
        %s804 = scalar_select %p803, %s46, 1
        %s805 = scalar_lea.vmem %s9, %s804
        %p806 = scmp.lt.s32.totalorder %s46, 1
        %s807 = scalar_select %p806, %s46, 1
        %s808 = scalar_lea.vmem %s10, %s807
        %p809 = scmp.lt.s32.totalorder %s46, 1
        %s810 = scalar_select %p809, %s46, 1
        %s811 = scalar_lea.vmem %s11, %s810
        %s812 = smul.u32 2, %s45
        %p814 = scmp.eq.s32.totalorder %s46, 0
        // Predicated region
        $region101: #{tpu_custom_call.1} parent=67 // pred_check
          %p815 = pneg %p814
        $region102: #{tpu_custom_call.1} parent=67 // pred_check_branch
          %817 = sbr.rel (%p815) target = $region104
        $region103: #{tpu_custom_call.1} parent=67 // pred_region
          %v818 = vld [vmem:[%s638] sm:$0xff]
          %v819 = vld [vmem:[%s638 + $0x8] sm:$0xff]
          %820 = vst [vmem:[%s797] sm:$0xff] %v818
          %821 = vst [vmem:[%s797 + $0x8] sm:$0xff] %v819
        $region104: #{tpu_custom_call.1} parent=67 // pred_fallthru
          _
        %v822 = vld [vmem:[%s797] sm:$0xff]
        %v823 = vld [vmem:[%s797 + $0x8] sm:$0xff]
        %v824 = vld [vmem:[%s658] sm:$0xff]
        %v825 = vld [vmem:[%s658 + $0x8] sm:$0xf]
        %v826 = vld [vmem:[%s658 + $0xc] sm:$0xff]
        %v827 = vld [vmem:[%s658 + $0x14] sm:$0xf]
        %v828 = vld [vmem:[%s658 + $0x18] sm:$0xff]
        %v829 = vld [vmem:[%s658 + $0x20] sm:$0xf]
        %v830 = vld [vmem:[%s658 + $0x24] sm:$0xff]
        %v831 = vld [vmem:[%s658 + $0x2c] sm:$0xf]
        %v832 = vld [vmem:[%s658 + $0x30] sm:$0xff]
        %v833 = vld [vmem:[%s658 + $0x38] sm:$0xf]
        %v834 = vld [vmem:[%s658 + $0x3c] sm:$0xff]
        %v835 = vld [vmem:[%s658 + $0x44] sm:$0xf]
        %v836 = vld [vmem:[%s658 + $0x48] sm:$0xff]
        %v837 = vld [vmem:[%s658 + $0x50] sm:$0xf]
        %v838 = vld [vmem:[%s658 + $0x54] sm:$0xff]
        %v839 = vld [vmem:[%s658 + $0x5c] sm:$0xf]
        %v840 = vld [vmem:[%s658 + $0x60] sm:$0xff]
        %v841 = vld [vmem:[%s658 + $0x68] sm:$0xf]
        %v842 = vld [vmem:[%s658 + $0x6c] sm:$0xff]
        %v843 = vld [vmem:[%s658 + $0x74] sm:$0xf]
        %v844 = vld [vmem:[%s658 + $0x78] sm:$0xff]
        %v845 = vld [vmem:[%s658 + $0x80] sm:$0xf]
        %v846 = vld [vmem:[%s658 + $0x84] sm:$0xff]
        %v847 = vld [vmem:[%s658 + $0x8c] sm:$0xf]
        %v848 = vld [vmem:[%s658 + $0x90] sm:$0xff]
        %v849 = vld [vmem:[%s658 + $0x98] sm:$0xf]
        %v850 = vld [vmem:[%s658 + $0x9c] sm:$0xff]
        %v851 = vld [vmem:[%s658 + $0xa4] sm:$0xf]
        %v852 = vld [vmem:[%s658 + $0xa8] sm:$0xff]
        %v853 = vld [vmem:[%s658 + $0xb0] sm:$0xf]
        %v854 = vld [vmem:[%s658 + $0xb4] sm:$0xff]
        %v855 = vld [vmem:[%s658 + $0xbc] sm:$0xf]
        %v856 = vld [vmem:[%s668] sm:$0xf]
        %v857 = vld [vmem:[%s668 + $0x4] sm:$0xf]
        %v858 = vld [vmem:[%s668 + $0x8] sm:$0xf]
        %v859 = vld [vmem:[%s668 + $0xc] sm:$0xf]
        %v860 = vld [vmem:[%s668 + $0x10] sm:$0xf]
        %v861 = vld [vmem:[%s668 + $0x14] sm:$0xf]
        %v862 = vld [vmem:[%s668 + $0x18] sm:$0xf]
        %v863 = vld [vmem:[%s668 + $0x1c] sm:$0xf]
        %v864 = vld [vmem:[%s668 + $0x20] sm:$0xf]
        %v865 = vld [vmem:[%s668 + $0x24] sm:$0xf]
        %v866 = vld [vmem:[%s668 + $0x28] sm:$0xf]
        %v867 = vld [vmem:[%s668 + $0x2c] sm:$0xf]
        %v868 = vld [vmem:[%s668 + $0x30] sm:$0xf]
        %v869 = vld [vmem:[%s668 + $0x34] sm:$0xf]
        %v870 = vld [vmem:[%s668 + $0x38] sm:$0xf]
        %v871 = vld [vmem:[%s668 + $0x3c] sm:$0xf]
        %v872 = vld [vmem:[%s648] sm:$0xf]
        %v873 = vld [vmem:[%s648 + $0x4] sm:$0xf]
        %v874 = vunpack.c.l.bf16 %v872
        %v875 = vunpack.c.l.bf16 %v873
        %v876 = vpack.c.bf16 %v823, %v822
        %v909 = vunpack.c.l.b16 %v824
        %v910 = vunpack.c.h.b16 %v824
        %v911 = vunpack.c.l.b16 %v825
        %v912 = vunpack.c.l.b16 %v826
        %v913 = vunpack.c.h.b16 %v826
        %v914 = vunpack.c.l.b16 %v827
        %v915 = vunpack.c.l.b16 %v828
        %v916 = vunpack.c.h.b16 %v828
        %v917 = vunpack.c.l.b16 %v829
        %v918 = vunpack.c.l.b16 %v830
        %v919 = vunpack.c.h.b16 %v830
        %v920 = vunpack.c.l.b16 %v831
        %v921 = vunpack.c.l.b16 %v832
        %v922 = vunpack.c.h.b16 %v832
        %v923 = vunpack.c.l.b16 %v833
        %v924 = vunpack.c.l.b16 %v834
        %v925 = vunpack.c.h.b16 %v834
        %v926 = vunpack.c.l.b16 %v835
        %v927 = vunpack.c.l.b16 %v836
        %v928 = vunpack.c.h.b16 %v836
        %v929 = vunpack.c.l.b16 %v837
        %v930 = vunpack.c.l.b16 %v838
        %v931 = vunpack.c.h.b16 %v838
        %v932 = vunpack.c.l.b16 %v839
        %v933 = vunpack.c.l.b16 %v840
        %v934 = vunpack.c.h.b16 %v840
        %v935 = vunpack.c.l.b16 %v841
        %v936 = vunpack.c.l.b16 %v842
        %v937 = vunpack.c.h.b16 %v842
        %v938 = vunpack.c.l.b16 %v843
        %v939 = vunpack.c.l.b16 %v844
        %v940 = vunpack.c.h.b16 %v844
        %v941 = vunpack.c.l.b16 %v845
        %v942 = vunpack.c.l.b16 %v846
        %v943 = vunpack.c.h.b16 %v846
        %v944 = vunpack.c.l.b16 %v847
        %v945 = vunpack.c.l.b16 %v848
        %v946 = vunpack.c.h.b16 %v848
        %v947 = vunpack.c.l.b16 %v849
        %v948 = vunpack.c.l.b16 %v850
        %v949 = vunpack.c.h.b16 %v850
        %v950 = vunpack.c.l.b16 %v851
        %v951 = vunpack.c.l.b16 %v852
        %v952 = vunpack.c.h.b16 %v852
        %v953 = vunpack.c.l.b16 %v853
        %v954 = vunpack.c.l.b16 %v854
        %v955 = vunpack.c.h.b16 %v854
        %v956 = vunpack.c.l.b16 %v855
        %v957 = vpack.c.b16 %v912, %v909
        %v958 = vpack.c.b16 %v913, %v910
        %v959 = vpack.c.b16 %v914, %v911
        %v960 = vpack.c.b16 %v918, %v915
        %v961 = vpack.c.b16 %v919, %v916
        %v962 = vpack.c.b16 %v920, %v917
        %v963 = vpack.c.b16 %v924, %v921
        %v964 = vpack.c.b16 %v925, %v922
        %v965 = vpack.c.b16 %v926, %v923
        %v966 = vpack.c.b16 %v930, %v927
        %v967 = vpack.c.b16 %v931, %v928
        %v968 = vpack.c.b16 %v932, %v929
        %v969 = vpack.c.b16 %v936, %v933
        %v970 = vpack.c.b16 %v937, %v934
        %v971 = vpack.c.b16 %v938, %v935
        %v972 = vpack.c.b16 %v942, %v939
        %v973 = vpack.c.b16 %v943, %v940
        %v974 = vpack.c.b16 %v944, %v941
        %v975 = vpack.c.b16 %v948, %v945
        %v976 = vpack.c.b16 %v949, %v946
        %v977 = vpack.c.b16 %v950, %v947
        %v978 = vpack.c.b16 %v954, %v951
        %v979 = vpack.c.b16 %v955, %v952
        %v980 = vpack.c.b16 %v956, %v953
        %1005 = vmatpush.bf16.msra.mxu0 %v978
        %1006 = vmatpush.bf16.msra.mxu0 %v975
        %1007 = vmatpush.bf16.msra.mxu0 %v972
        %1008 = vmatpush.bf16.msra.mxu0 %v969
        %1009 = vmatpush.bf16.msra.mxu0 %v966
        %1010 = vmatpush.bf16.msra.mxu0 %v963
        %1011 = vmatpush.bf16.msra.mxu0 %v960
        %1012 = vmatpush.bf16.msra.mxu0 %v957
        %1013 = vmatmul.bf16.gmra.mxu0 %v876
        %v1014 = vpop.f32.mrf.mxu0
        %v1015 = vadd.f32 0.0, %v1014
        %v1016 = vpop.f32.mrf.mxu0
        %v1017 = vadd.f32 0.0, %v1016
        %1018 = vdwg.mxu0
        %1019 = vmatpush.bf16.msra.mxu0 %v979
        %1020 = vmatpush.bf16.msra.mxu0 %v976
        %1021 = vmatpush.bf16.msra.mxu0 %v973
        %1022 = vmatpush.bf16.msra.mxu0 %v970
        %1023 = vmatpush.bf16.msra.mxu0 %v967
        %1024 = vmatpush.bf16.msra.mxu0 %v964
        %1025 = vmatpush.bf16.msra.mxu0 %v961
        %1026 = vmatpush.bf16.msra.mxu0 %v958
        %1027 = vmatmul.bf16.gmra.mxu0 %v876
        %v1028 = vpop.f32.mrf.mxu0
        %v1029 = vadd.f32 0.0, %v1028
        %v1030 = vpop.f32.mrf.mxu0
        %v1031 = vadd.f32 0.0, %v1030
        %1032 = vdwg.mxu0
        %1033 = vmatpush.bf16.msra.mxu0 %v980
        %1034 = vmatpush.bf16.msra.mxu0 %v977
        %1035 = vmatpush.bf16.msra.mxu0 %v974
        %1036 = vmatpush.bf16.msra.mxu0 %v971
        %1037 = vmatpush.bf16.msra.mxu0 %v968
        %1038 = vmatpush.bf16.msra.mxu0 %v965
        %1039 = vmatpush.bf16.msra.mxu0 %v962
        %1040 = vmatpush.bf16.msra.mxu0 %v959
        %1041 = vmatmul.bf16.gmra.mxu0 %v876
        %v1042 = vpop.f32.mrf.mxu0
        %v1043 = vadd.f32 0.0, %v1042
        %v1044 = vpop.f32.mrf.mxu0
        %v1045 = vadd.f32 0.0, %v1044
        %1046 = vdwg.mxu0
        %v1047 = vpack.c.bf16 %v1015, %v1015
        %v1048 = vpack.c.bf16 %v1017, %v1017
        %v1049 = vpack.c.bf16 %v1029, %v1029
        %v1050 = vpack.c.bf16 %v1031, %v1031
        %v1053 = vunpack.c.l.b16 %v1047
        %v1054 = vunpack.c.l.b16 %v1048
        %v1055 = vpack.c.b16 %v1054, %v1053
        %v1058 = vunpack.c.l.b16 %v1049
        %v1059 = vunpack.c.l.b16 %v1050
        %v1060 = vpack.c.b16 %v1059, %v1058
        %vm1061 = vcmask 523264
        %v1063 = vsel %vm1061, %v1055, 0
        %v1066 = vsel %vm1061, %v1060, 0
        %1068 = vmatpush.bf16.xpose.msra.mxu0 0
        %1069 = vmatpush.bf16.xpose.msra.mxu0 0
        %1070 = vmatpush.bf16.xpose.msra.mxu0 0
        %1071 = vmatpush.bf16.xpose.msra.mxu0 0
        %1072 = vmatpush.bf16.xpose.msra.mxu0 0
        %1073 = vmatpush.bf16.xpose.msra.mxu0 0
        %1074 = vmatpush.bf16.xpose.msra.mxu0 0
        %1075 = vmatpush.bf16.xpose.msra.mxu0 %v1066
        %1076 = vmatmul.bf16.gmra.mxu0 %v1063
        %v1077 = vpop.f32.mrf.mxu0
        %v1078 = vadd.f32 %v874, %v1077
        %v1079 = vpop.f32.mrf.mxu0
        %v1080 = vadd.f32 %v875, %v1079
        %1081 = vdwg.mxu0
        %vm1082 = vcmask 130048
        %v1083 = vsel %vm1082, %v1078, -inf
        %1084 = vmax.xlane.f32.xlu0 %v1083
        %v1085 = vpop.xlane.xlu0 %1084
        %v1086 = vsel %vm1082, %v1080, -inf
        %1087 = vmax.xlane.f32.xlu0 %v1086
        %v1088 = vpop.xlane.xlu0 %1087
        %v1089 = vsub.f32 %v1078, %v1085
        %v1090 = vsub.f32 %v1080, %v1088
        %v1091 = vmul.f32 %v1089, 1.442695
        %v1092 = vpow.pop %v1091
        %v1093 = vmul.f32 %v1090, 1.442695
        %v1094 = vpow.pop %v1093
        %v1095 = vsel %vm1082, %v1092, 0.0
        %1096 = vadd.xlane.f32.xlu0 %v1095
        %v1097 = vpop.xlane.xlu0 %1096
        %v1098 = vsel %vm1082, %v1094, 0.0
        %1099 = vadd.xlane.f32.xlu0 %v1098
        %v1100 = vpop.xlane.xlu0 %1099
        %v1101 = vrcp.pop %v1097
        %v1102 = vrcp.pop %v1100
        %v1103 = vmul.f32 %v1092, %v1101
        %v1104 = vmul.f32 %v1094, %v1102
        %v1105 = vpack.c.bf16 %v1103, %v1103
        %v1106 = vpack.c.bf16 %v1104, %v1104
        %v1107 = vpack.c.bf16 %v1043, %v1043
        %v1108 = vpack.c.bf16 %v1045, %v1045
        %v1111 = vunpack.c.l.b16 %v1105
        %v1112 = vunpack.c.l.b16 %v1106
        %v1113 = vpack.c.b16 %v1112, %v1111
        %v1116 = vunpack.c.l.b16 %v1107
        %v1117 = vunpack.c.l.b16 %v1108
        %v1118 = vpack.c.b16 %v1117, %v1116
        %v1121 = vsel %vm1082, %v1113, 0
        %1123 = vmatpush.bf16.msra.mxu0 0
        %1124 = vmatpush.bf16.msra.mxu0 0
        %1125 = vmatpush.bf16.msra.mxu0 0
        %1126 = vmatpush.bf16.msra.mxu0 0
        %1127 = vmatpush.bf16.msra.mxu0 0
        %1128 = vmatpush.bf16.msra.mxu0 0
        %1129 = vmatpush.bf16.msra.mxu0 0
        %1130 = vmatpush.bf16.msra.mxu0 %v1118
        %1131 = vmatmul.bf16.gmra.mxu0 %v1121
        %v1132 = vpop.f32.mrf.mxu0
        %v1133 = vadd.f32 0.0, %v1132
        %v1134 = vpop.f32.mrf.mxu0
        %v1135 = vadd.f32 0.0, %v1134
        %1136 = vdwg.mxu0
        %v1137 = vpack.c.bf16 %v1133, %v1133
        %v1138 = vpack.c.bf16 %v1135, %v1135
        %1139 = vrot.lane.b32.xlu0 %v1055, 64
        %v1140 = vpop.permute.xlu0 %1139
        %1141 = vrot.lane.b32.xlu0 %v1060, 64
        %v1142 = vpop.permute.xlu0 %1141
        %v1144 = vsel %vm1061, %v1140, 0
        %v1147 = vsel %vm1061, %v1142, 0
        %1149 = vmatpush.bf16.xpose.msra.mxu0 0
        %1150 = vmatpush.bf16.xpose.msra.mxu0 0
        %1151 = vmatpush.bf16.xpose.msra.mxu0 0
        %1152 = vmatpush.bf16.xpose.msra.mxu0 0
        %1153 = vmatpush.bf16.xpose.msra.mxu0 0
        %1154 = vmatpush.bf16.xpose.msra.mxu0 0
        %1155 = vmatpush.bf16.xpose.msra.mxu0 0
        %1156 = vmatpush.bf16.xpose.msra.mxu0 %v1147
        %1157 = vmatmul.bf16.gmra.mxu0 %v1144
        %v1158 = vpop.f32.mrf.mxu0
        %v1159 = vadd.f32 %v874, %v1158
        %v1160 = vpop.f32.mrf.mxu0
        %v1161 = vadd.f32 %v875, %v1160
        %1162 = vdwg.mxu0
        %v1163 = vsel %vm1082, %v1159, -inf
        %1164 = vmax.xlane.f32.xlu0 %v1163
        %v1165 = vpop.xlane.xlu0 %1164
        %v1166 = vsel %vm1082, %v1161, -inf
        %1167 = vmax.xlane.f32.xlu0 %v1166
        %v1168 = vpop.xlane.xlu0 %1167
        %v1169 = vsub.f32 %v1159, %v1165
        %v1170 = vsub.f32 %v1161, %v1168
        %v1171 = vmul.f32 %v1169, 1.442695
        %v1172 = vpow.pop %v1171
        %v1173 = vmul.f32 %v1170, 1.442695
        %v1174 = vpow.pop %v1173
        %v1175 = vsel %vm1082, %v1172, 0.0
        %1176 = vadd.xlane.f32.xlu0 %v1175
        %v1177 = vpop.xlane.xlu0 %1176
        %v1178 = vsel %vm1082, %v1174, 0.0
        %1179 = vadd.xlane.f32.xlu0 %v1178
        %v1180 = vpop.xlane.xlu0 %1179
        %v1181 = vrcp.pop %v1177
        %v1182 = vrcp.pop %v1180
        %v1183 = vmul.f32 %v1172, %v1181
        %v1184 = vmul.f32 %v1174, %v1182
        %v1185 = vpack.c.bf16 %v1183, %v1183
        %v1186 = vpack.c.bf16 %v1184, %v1184
        %v1189 = vunpack.c.l.b16 %v1185
        %v1190 = vunpack.c.l.b16 %v1186
        %v1191 = vpack.c.b16 %v1190, %v1189
        %1192 = vrot.lane.b32.xlu0 %v1118, 64
        %v1193 = vpop.permute.xlu0 %1192
        %v1196 = vsel %vm1082, %v1191, 0
        %1198 = vmatpush.bf16.msra.mxu0 0
        %1199 = vmatpush.bf16.msra.mxu0 0
        %1200 = vmatpush.bf16.msra.mxu0 0
        %1201 = vmatpush.bf16.msra.mxu0 0
        %1202 = vmatpush.bf16.msra.mxu0 0
        %1203 = vmatpush.bf16.msra.mxu0 0
        %1204 = vmatpush.bf16.msra.mxu0 0
        %1205 = vmatpush.bf16.msra.mxu0 %v1193
        %1206 = vmatmul.bf16.gmra.mxu0 %v1196
        %v1207 = vpop.f32.mrf.mxu0
        %v1208 = vadd.f32 0.0, %v1207
        %v1209 = vpop.f32.mrf.mxu0
        %v1210 = vadd.f32 0.0, %v1209
        %1211 = vdwg.mxu0
        %v1212 = vpack.c.bf16 %v1208, %v1208
        %v1213 = vpack.c.bf16 %v1210, %v1210
        %v1216 = vunpack.c.l.b16 %v1137
        %v1217 = vunpack.c.l.b16 %v1138
        %v1218 = vpack.c.b16 %v1217, %v1216
        %v1221 = vunpack.c.l.b16 %v1212
        %v1222 = vunpack.c.l.b16 %v1213
        %v1223 = vpack.c.b16 %v1222, %v1221
        %1224 = vrot.lane.b32.xlu0 %v1223, 64
        %v1225 = vpop.permute.xlu0 %1224
        %v1228 = vsel %vm1061, %v1218, %v1225
        %v1246 = vunpack.c.l.b16 %v856
        %v1247 = vunpack.c.l.b16 %v857
        %v1248 = vunpack.c.l.b16 %v858
        %v1249 = vunpack.c.l.b16 %v859
        %v1250 = vunpack.c.l.b16 %v860
        %v1251 = vunpack.c.l.b16 %v861
        %v1252 = vunpack.c.l.b16 %v862
        %v1253 = vunpack.c.l.b16 %v863
        %v1254 = vunpack.c.l.b16 %v864
        %v1255 = vunpack.c.l.b16 %v865
        %v1256 = vunpack.c.l.b16 %v866
        %v1257 = vunpack.c.l.b16 %v867
        %v1258 = vunpack.c.l.b16 %v868
        %v1259 = vunpack.c.l.b16 %v869
        %v1260 = vunpack.c.l.b16 %v870
        %v1261 = vunpack.c.l.b16 %v871
        %v1262 = vpack.c.b16 %v1247, %v1246
        %v1263 = vpack.c.b16 %v1249, %v1248
        %v1264 = vpack.c.b16 %v1251, %v1250
        %v1265 = vpack.c.b16 %v1253, %v1252
        %v1266 = vpack.c.b16 %v1255, %v1254
        %v1267 = vpack.c.b16 %v1257, %v1256
        %v1268 = vpack.c.b16 %v1259, %v1258
        %v1269 = vpack.c.b16 %v1261, %v1260
        %1278 = vmatpush.bf16.msra.mxu0 %v1269
        %1279 = vmatpush.bf16.msra.mxu0 %v1268
        %1280 = vmatpush.bf16.msra.mxu0 %v1267
        %1281 = vmatpush.bf16.msra.mxu0 %v1266
        %1282 = vmatpush.bf16.msra.mxu0 %v1265
        %1283 = vmatpush.bf16.msra.mxu0 %v1264
        %1284 = vmatpush.bf16.msra.mxu0 %v1263
        %1285 = vmatpush.bf16.msra.mxu0 %v1262
        %1286 = vmatmul.bf16.gmra.mxu0 %v1228
        %v1287 = vpop.f32.mrf.mxu0
        %v1288 = vadd.f32 %v822, %v1287
        %v1289 = vpop.f32.mrf.mxu0
        %v1290 = vadd.f32 %v823, %v1289
        %1291 = vdwg.mxu0
        %v1292 = vld [vmem:[%s678] sm:$0x1]
        %v1293 = vld [vmem:[%s802] sm:$0x1]
        %1294 = vadd.xlane.f32.xlu0 %v1288
        %v1295 = vpop.xlane.xlu0 %1294
        %1296 = vadd.xlane.f32.xlu0 %v1290
        %v1297 = vpop.xlane.xlu0 %1296
        %v1298 = vrcp.pop 128.0
        %v1299 = vmul.f32 128.0, %v1298
        %v1300 = vsub.f32 1.0, %v1299
        %v1301 = vmul.f32 %v1298, %v1300
        %v1302 = vadd.f32 %v1298, %v1301
        %vm1303 = vweird.f32 %v1298
        %v1304 = vsel %vm1303, %v1298, %v1302
        %v1305 = vmul.f32 %v1295, %v1304
        %v1306 = vmul.f32 %v1297, %v1304
        %v1307 = vsub.f32 %v1288, %v1305
        %v1308 = vsub.f32 %v1290, %v1306
        %v1309 = vmul.f32 %v1307, %v1307
        %v1310 = vmul.f32 %v1308, %v1308
        %1311 = vadd.xlane.f32.xlu0 %v1309
        %v1312 = vpop.xlane.xlu0 %1311
        %1313 = vadd.xlane.f32.xlu0 %v1310
        %v1314 = vpop.xlane.xlu0 %1313
        %v1315 = vmul.f32 %v1312, %v1304
        %v1316 = vmul.f32 %v1314, %v1304
        %v1317 = vadd.f32 %v1315, 1e-06
        %v1318 = vadd.f32 %v1316, 1e-06
        %v1319 = vrsqrt.pop %v1317
        %v1320 = vmul.f32 %v1319, %v1317
        %v1321 = vmul.f32 %v1320, %v1319
        %v1322 = vmul.f32 0.5, %v1321
        %v1323 = vsub.f32 1.5, %v1322
        %v1324 = vmul.f32 %v1319, %v1323
        %vm1325 = vweird.f32 %v1317
        %vm1326 = vweird.f32 %v1319
        %vm1327 = vmor %vm1325, %vm1326
        %v1328 = vsel %vm1327, %v1319, %v1324
        %v1329 = vrsqrt.pop %v1318
        %v1330 = vmul.f32 %v1329, %v1318
        %v1331 = vmul.f32 %v1330, %v1329
        %v1332 = vmul.f32 0.5, %v1331
        %v1333 = vsub.f32 1.5, %v1332
        %v1334 = vmul.f32 %v1329, %v1333
        %vm1335 = vweird.f32 %v1318
        %vm1336 = vweird.f32 %v1329
        %vm1337 = vmor %vm1335, %vm1336
        %v1338 = vsel %vm1337, %v1329, %v1334
        %v1339 = vmul.f32 %v1307, %v1328
        %v1340 = vmul.f32 %v1308, %v1338
        %v1342 = vperm.slane %v1292, 0
        %v1344 = vmul.f32 %v1339, %v1342
        %v1345 = vmul.f32 %v1340, %v1342
        %v1347 = vperm.slane %v1293, 0
        %v1349 = vadd.f32 %v1344, %v1347
        %v1350 = vadd.f32 %v1345, %v1347
        %s1351 = scalar_lea.vmem %s658, 192 [#allocation7]
        %v1352 = vld [vmem:[%s1351] sm:$0xff]
        %v1353 = vld [vmem:[%s1351 + $0x8] sm:$0xf]
        %v1354 = vld [vmem:[%s1351 + $0xc] sm:$0xff]
        %v1355 = vld [vmem:[%s1351 + $0x14] sm:$0xf]
        %v1356 = vld [vmem:[%s1351 + $0x18] sm:$0xff]
        %v1357 = vld [vmem:[%s1351 + $0x20] sm:$0xf]
        %v1358 = vld [vmem:[%s1351 + $0x24] sm:$0xff]
        %v1359 = vld [vmem:[%s1351 + $0x2c] sm:$0xf]
        %v1360 = vld [vmem:[%s1351 + $0x30] sm:$0xff]
        %v1361 = vld [vmem:[%s1351 + $0x38] sm:$0xf]
        %v1362 = vld [vmem:[%s1351 + $0x3c] sm:$0xff]
        %v1363 = vld [vmem:[%s1351 + $0x44] sm:$0xf]
        %v1364 = vld [vmem:[%s1351 + $0x48] sm:$0xff]
        %v1365 = vld [vmem:[%s1351 + $0x50] sm:$0xf]
        %v1366 = vld [vmem:[%s1351 + $0x54] sm:$0xff]
        %v1367 = vld [vmem:[%s1351 + $0x5c] sm:$0xf]
        %v1368 = vld [vmem:[%s1351 + $0x60] sm:$0xff]
        %v1369 = vld [vmem:[%s1351 + $0x68] sm:$0xf]
        %v1370 = vld [vmem:[%s1351 + $0x6c] sm:$0xff]
        %v1371 = vld [vmem:[%s1351 + $0x74] sm:$0xf]
        %v1372 = vld [vmem:[%s1351 + $0x78] sm:$0xff]
        %v1373 = vld [vmem:[%s1351 + $0x80] sm:$0xf]
        %v1374 = vld [vmem:[%s1351 + $0x84] sm:$0xff]
        %v1375 = vld [vmem:[%s1351 + $0x8c] sm:$0xf]
        %v1376 = vld [vmem:[%s1351 + $0x90] sm:$0xff]
        %v1377 = vld [vmem:[%s1351 + $0x98] sm:$0xf]
        %v1378 = vld [vmem:[%s1351 + $0x9c] sm:$0xff]
        %v1379 = vld [vmem:[%s1351 + $0xa4] sm:$0xf]
        %v1380 = vld [vmem:[%s1351 + $0xa8] sm:$0xff]
        %v1381 = vld [vmem:[%s1351 + $0xb0] sm:$0xf]
        %v1382 = vld [vmem:[%s1351 + $0xb4] sm:$0xff]
        %v1383 = vld [vmem:[%s1351 + $0xbc] sm:$0xf]
        %s1384 = scalar_lea.vmem %s668, 64 [#allocation8]
        %v1385 = vld [vmem:[%s1384] sm:$0xf]
        %v1386 = vld [vmem:[%s1384 + $0x4] sm:$0xf]
        %v1387 = vld [vmem:[%s1384 + $0x8] sm:$0xf]
        %v1388 = vld [vmem:[%s1384 + $0xc] sm:$0xf]
        %v1389 = vld [vmem:[%s1384 + $0x10] sm:$0xf]
        %v1390 = vld [vmem:[%s1384 + $0x14] sm:$0xf]
        %v1391 = vld [vmem:[%s1384 + $0x18] sm:$0xf]
        %v1392 = vld [vmem:[%s1384 + $0x1c] sm:$0xf]
        %v1393 = vld [vmem:[%s1384 + $0x20] sm:$0xf]
        %v1394 = vld [vmem:[%s1384 + $0x24] sm:$0xf]
        %v1395 = vld [vmem:[%s1384 + $0x28] sm:$0xf]
        %v1396 = vld [vmem:[%s1384 + $0x2c] sm:$0xf]
        %v1397 = vld [vmem:[%s1384 + $0x30] sm:$0xf]
        %v1398 = vld [vmem:[%s1384 + $0x34] sm:$0xf]
        %v1399 = vld [vmem:[%s1384 + $0x38] sm:$0xf]
        %v1400 = vld [vmem:[%s1384 + $0x3c] sm:$0xf]
        %s1401 = scalar_lea.vmem %s648, 8 [#allocation5]
        %v1402 = vld [vmem:[%s1401] sm:$0xf]
        %v1403 = vld [vmem:[%s1401 + $0x4] sm:$0xf]
        %v1404 = vunpack.c.l.bf16 %v1402
        %v1405 = vunpack.c.l.bf16 %v1403
        %v1406 = vpack.c.bf16 %v1350, %v1349
        %v1439 = vunpack.c.l.b16 %v1352
        %v1440 = vunpack.c.h.b16 %v1352
        %v1441 = vunpack.c.l.b16 %v1353
        %v1442 = vunpack.c.l.b16 %v1354
        %v1443 = vunpack.c.h.b16 %v1354
        %v1444 = vunpack.c.l.b16 %v1355
        %v1445 = vunpack.c.l.b16 %v1356
        %v1446 = vunpack.c.h.b16 %v1356
        %v1447 = vunpack.c.l.b16 %v1357
        %v1448 = vunpack.c.l.b16 %v1358
        %v1449 = vunpack.c.h.b16 %v1358
        %v1450 = vunpack.c.l.b16 %v1359
        %v1451 = vunpack.c.l.b16 %v1360
        %v1452 = vunpack.c.h.b16 %v1360
        %v1453 = vunpack.c.l.b16 %v1361
        %v1454 = vunpack.c.l.b16 %v1362
        %v1455 = vunpack.c.h.b16 %v1362
        %v1456 = vunpack.c.l.b16 %v1363
        %v1457 = vunpack.c.l.b16 %v1364
        %v1458 = vunpack.c.h.b16 %v1364
        %v1459 = vunpack.c.l.b16 %v1365
        %v1460 = vunpack.c.l.b16 %v1366
        %v1461 = vunpack.c.h.b16 %v1366
        %v1462 = vunpack.c.l.b16 %v1367
        %v1463 = vunpack.c.l.b16 %v1368
        %v1464 = vunpack.c.h.b16 %v1368
        %v1465 = vunpack.c.l.b16 %v1369
        %v1466 = vunpack.c.l.b16 %v1370
        %v1467 = vunpack.c.h.b16 %v1370
        %v1468 = vunpack.c.l.b16 %v1371
        %v1469 = vunpack.c.l.b16 %v1372
        %v1470 = vunpack.c.h.b16 %v1372
        %v1471 = vunpack.c.l.b16 %v1373
        %v1472 = vunpack.c.l.b16 %v1374
        %v1473 = vunpack.c.h.b16 %v1374
        %v1474 = vunpack.c.l.b16 %v1375
        %v1475 = vunpack.c.l.b16 %v1376
        %v1476 = vunpack.c.h.b16 %v1376
        %v1477 = vunpack.c.l.b16 %v1377
        %v1478 = vunpack.c.l.b16 %v1378
        %v1479 = vunpack.c.h.b16 %v1378
        %v1480 = vunpack.c.l.b16 %v1379
        %v1481 = vunpack.c.l.b16 %v1380
        %v1482 = vunpack.c.h.b16 %v1380
        %v1483 = vunpack.c.l.b16 %v1381
        %v1484 = vunpack.c.l.b16 %v1382
        %v1485 = vunpack.c.h.b16 %v1382
        %v1486 = vunpack.c.l.b16 %v1383
        %v1487 = vpack.c.b16 %v1442, %v1439
        %v1488 = vpack.c.b16 %v1443, %v1440
        %v1489 = vpack.c.b16 %v1444, %v1441
        %v1490 = vpack.c.b16 %v1448, %v1445
        %v1491 = vpack.c.b16 %v1449, %v1446
        %v1492 = vpack.c.b16 %v1450, %v1447
        %v1493 = vpack.c.b16 %v1454, %v1451
        %v1494 = vpack.c.b16 %v1455, %v1452
        %v1495 = vpack.c.b16 %v1456, %v1453
        %v1496 = vpack.c.b16 %v1460, %v1457
        %v1497 = vpack.c.b16 %v1461, %v1458
        %v1498 = vpack.c.b16 %v1462, %v1459
        %v1499 = vpack.c.b16 %v1466, %v1463
        %v1500 = vpack.c.b16 %v1467, %v1464
        %v1501 = vpack.c.b16 %v1468, %v1465
        %v1502 = vpack.c.b16 %v1472, %v1469
        %v1503 = vpack.c.b16 %v1473, %v1470
        %v1504 = vpack.c.b16 %v1474, %v1471
        %v1505 = vpack.c.b16 %v1478, %v1475
        %v1506 = vpack.c.b16 %v1479, %v1476
        %v1507 = vpack.c.b16 %v1480, %v1477
        %v1508 = vpack.c.b16 %v1484, %v1481
        %v1509 = vpack.c.b16 %v1485, %v1482
        %v1510 = vpack.c.b16 %v1486, %v1483
        %1535 = vmatpush.bf16.msra.mxu0 %v1508
        %1536 = vmatpush.bf16.msra.mxu0 %v1505
        %1537 = vmatpush.bf16.msra.mxu0 %v1502
        %1538 = vmatpush.bf16.msra.mxu0 %v1499
        %1539 = vmatpush.bf16.msra.mxu0 %v1496
        %1540 = vmatpush.bf16.msra.mxu0 %v1493
        %1541 = vmatpush.bf16.msra.mxu0 %v1490
        %1542 = vmatpush.bf16.msra.mxu0 %v1487
        %1543 = vmatmul.bf16.gmra.mxu0 %v1406
        %v1544 = vpop.f32.mrf.mxu0
        %v1545 = vadd.f32 0.0, %v1544
        %v1546 = vpop.f32.mrf.mxu0
        %v1547 = vadd.f32 0.0, %v1546
        %1548 = vdwg.mxu0
        %1549 = vmatpush.bf16.msra.mxu0 %v1509
        %1550 = vmatpush.bf16.msra.mxu0 %v1506
        %1551 = vmatpush.bf16.msra.mxu0 %v1503
        %1552 = vmatpush.bf16.msra.mxu0 %v1500
        %1553 = vmatpush.bf16.msra.mxu0 %v1497
        %1554 = vmatpush.bf16.msra.mxu0 %v1494
        %1555 = vmatpush.bf16.msra.mxu0 %v1491
        %1556 = vmatpush.bf16.msra.mxu0 %v1488
        %1557 = vmatmul.bf16.gmra.mxu0 %v1406
        %v1558 = vpop.f32.mrf.mxu0
        %v1559 = vadd.f32 0.0, %v1558
        %v1560 = vpop.f32.mrf.mxu0
        %v1561 = vadd.f32 0.0, %v1560
        %1562 = vdwg.mxu0
        %1563 = vmatpush.bf16.msra.mxu0 %v1510
        %1564 = vmatpush.bf16.msra.mxu0 %v1507
        %1565 = vmatpush.bf16.msra.mxu0 %v1504
        %1566 = vmatpush.bf16.msra.mxu0 %v1501
        %1567 = vmatpush.bf16.msra.mxu0 %v1498
        %1568 = vmatpush.bf16.msra.mxu0 %v1495
        %1569 = vmatpush.bf16.msra.mxu0 %v1492
        %1570 = vmatpush.bf16.msra.mxu0 %v1489
        %1571 = vmatmul.bf16.gmra.mxu0 %v1406
        %v1572 = vpop.f32.mrf.mxu0
        %v1573 = vadd.f32 0.0, %v1572
        %v1574 = vpop.f32.mrf.mxu0
        %v1575 = vadd.f32 0.0, %v1574
        %1576 = vdwg.mxu0
        %v1577 = vpack.c.bf16 %v1545, %v1545
        %v1578 = vpack.c.bf16 %v1547, %v1547
        %v1579 = vpack.c.bf16 %v1559, %v1559
        %v1580 = vpack.c.bf16 %v1561, %v1561
        %v1583 = vunpack.c.l.b16 %v1577
        %v1584 = vunpack.c.l.b16 %v1578
        %v1585 = vpack.c.b16 %v1584, %v1583
        %v1588 = vunpack.c.l.b16 %v1579
        %v1589 = vunpack.c.l.b16 %v1580
        %v1590 = vpack.c.b16 %v1589, %v1588
        %v1592 = vsel %vm1061, %v1585, 0
        %v1595 = vsel %vm1061, %v1590, 0
        %1597 = vmatpush.bf16.xpose.msra.mxu0 0
        %1598 = vmatpush.bf16.xpose.msra.mxu0 0
        %1599 = vmatpush.bf16.xpose.msra.mxu0 0
        %1600 = vmatpush.bf16.xpose.msra.mxu0 0
        %1601 = vmatpush.bf16.xpose.msra.mxu0 0
        %1602 = vmatpush.bf16.xpose.msra.mxu0 0
        %1603 = vmatpush.bf16.xpose.msra.mxu0 0
        %1604 = vmatpush.bf16.xpose.msra.mxu0 %v1595
        %1605 = vmatmul.bf16.gmra.mxu0 %v1592
        %v1606 = vpop.f32.mrf.mxu0
        %v1607 = vadd.f32 %v1404, %v1606
        %v1608 = vpop.f32.mrf.mxu0
        %v1609 = vadd.f32 %v1405, %v1608
        %1610 = vdwg.mxu0
        %v1611 = vsel %vm1082, %v1607, -inf
        %1612 = vmax.xlane.f32.xlu0 %v1611
        %v1613 = vpop.xlane.xlu0 %1612
        %v1614 = vsel %vm1082, %v1609, -inf
        %1615 = vmax.xlane.f32.xlu0 %v1614
        %v1616 = vpop.xlane.xlu0 %1615
        %v1617 = vsub.f32 %v1607, %v1613
        %v1618 = vsub.f32 %v1609, %v1616
        %v1619 = vmul.f32 %v1617, 1.442695
        %v1620 = vpow.pop %v1619
        %v1621 = vmul.f32 %v1618, 1.442695
        %v1622 = vpow.pop %v1621
        %v1623 = vsel %vm1082, %v1620, 0.0
        %1624 = vadd.xlane.f32.xlu0 %v1623
        %v1625 = vpop.xlane.xlu0 %1624
        %v1626 = vsel %vm1082, %v1622, 0.0
        %1627 = vadd.xlane.f32.xlu0 %v1626
        %v1628 = vpop.xlane.xlu0 %1627
        %v1629 = vrcp.pop %v1625
        %v1630 = vrcp.pop %v1628
        %v1631 = vmul.f32 %v1620, %v1629
        %v1632 = vmul.f32 %v1622, %v1630
        %v1633 = vpack.c.bf16 %v1631, %v1631
        %v1634 = vpack.c.bf16 %v1632, %v1632
        %v1635 = vpack.c.bf16 %v1573, %v1573
        %v1636 = vpack.c.bf16 %v1575, %v1575
        %v1639 = vunpack.c.l.b16 %v1633
        %v1640 = vunpack.c.l.b16 %v1634
        %v1641 = vpack.c.b16 %v1640, %v1639
        %v1644 = vunpack.c.l.b16 %v1635
        %v1645 = vunpack.c.l.b16 %v1636
        %v1646 = vpack.c.b16 %v1645, %v1644
        %v1649 = vsel %vm1082, %v1641, 0
        %1651 = vmatpush.bf16.msra.mxu0 0
        %1652 = vmatpush.bf16.msra.mxu0 0
        %1653 = vmatpush.bf16.msra.mxu0 0
        %1654 = vmatpush.bf16.msra.mxu0 0
        %1655 = vmatpush.bf16.msra.mxu0 0
        %1656 = vmatpush.bf16.msra.mxu0 0
        %1657 = vmatpush.bf16.msra.mxu0 0
        %1658 = vmatpush.bf16.msra.mxu0 %v1646
        %1659 = vmatmul.bf16.gmra.mxu0 %v1649
        %v1660 = vpop.f32.mrf.mxu0
        %v1661 = vadd.f32 0.0, %v1660
        %v1662 = vpop.f32.mrf.mxu0
        %v1663 = vadd.f32 0.0, %v1662
        %1664 = vdwg.mxu0
        %v1665 = vpack.c.bf16 %v1661, %v1661
        %v1666 = vpack.c.bf16 %v1663, %v1663
        %1667 = vrot.lane.b32.xlu0 %v1585, 64
        %v1668 = vpop.permute.xlu0 %1667
        %1669 = vrot.lane.b32.xlu0 %v1590, 64
        %v1670 = vpop.permute.xlu0 %1669
        %v1672 = vsel %vm1061, %v1668, 0
        %v1675 = vsel %vm1061, %v1670, 0
        %1677 = vmatpush.bf16.xpose.msra.mxu0 0
        %1678 = vmatpush.bf16.xpose.msra.mxu0 0
        %1679 = vmatpush.bf16.xpose.msra.mxu0 0
        %1680 = vmatpush.bf16.xpose.msra.mxu0 0
        %1681 = vmatpush.bf16.xpose.msra.mxu0 0
        %1682 = vmatpush.bf16.xpose.msra.mxu0 0
        %1683 = vmatpush.bf16.xpose.msra.mxu0 0
        %1684 = vmatpush.bf16.xpose.msra.mxu0 %v1675
        %1685 = vmatmul.bf16.gmra.mxu0 %v1672
        %v1686 = vpop.f32.mrf.mxu0
        %v1687 = vadd.f32 %v1404, %v1686
        %v1688 = vpop.f32.mrf.mxu0
        %v1689 = vadd.f32 %v1405, %v1688
        %1690 = vdwg.mxu0
        %v1691 = vsel %vm1082, %v1687, -inf
        %1692 = vmax.xlane.f32.xlu0 %v1691
        %v1693 = vpop.xlane.xlu0 %1692
        %v1694 = vsel %vm1082, %v1689, -inf
        %1695 = vmax.xlane.f32.xlu0 %v1694
        %v1696 = vpop.xlane.xlu0 %1695
        %v1697 = vsub.f32 %v1687, %v1693
        %v1698 = vsub.f32 %v1689, %v1696
        %v1699 = vmul.f32 %v1697, 1.442695
        %v1700 = vpow.pop %v1699
        %v1701 = vmul.f32 %v1698, 1.442695
        %v1702 = vpow.pop %v1701
        %v1703 = vsel %vm1082, %v1700, 0.0
        %1704 = vadd.xlane.f32.xlu0 %v1703
        %v1705 = vpop.xlane.xlu0 %1704
        %v1706 = vsel %vm1082, %v1702, 0.0
        %1707 = vadd.xlane.f32.xlu0 %v1706
        %v1708 = vpop.xlane.xlu0 %1707
        %v1709 = vrcp.pop %v1705
        %v1710 = vrcp.pop %v1708
        %v1711 = vmul.f32 %v1700, %v1709
        %v1712 = vmul.f32 %v1702, %v1710
        %v1713 = vpack.c.bf16 %v1711, %v1711
        %v1714 = vpack.c.bf16 %v1712, %v1712
        %v1717 = vunpack.c.l.b16 %v1713
        %v1718 = vunpack.c.l.b16 %v1714
        %v1719 = vpack.c.b16 %v1718, %v1717
        %1720 = vrot.lane.b32.xlu0 %v1646, 64
        %v1721 = vpop.permute.xlu0 %1720
        %v1724 = vsel %vm1082, %v1719, 0
        %1726 = vmatpush.bf16.msra.mxu0 0
        %1727 = vmatpush.bf16.msra.mxu0 0
        %1728 = vmatpush.bf16.msra.mxu0 0
        %1729 = vmatpush.bf16.msra.mxu0 0
        %1730 = vmatpush.bf16.msra.mxu0 0
        %1731 = vmatpush.bf16.msra.mxu0 0
        %1732 = vmatpush.bf16.msra.mxu0 0
        %1733 = vmatpush.bf16.msra.mxu0 %v1721
        %1734 = vmatmul.bf16.gmra.mxu0 %v1724
        %v1735 = vpop.f32.mrf.mxu0
        %v1736 = vadd.f32 0.0, %v1735
        %v1737 = vpop.f32.mrf.mxu0
        %v1738 = vadd.f32 0.0, %v1737
        %1739 = vdwg.mxu0
        %v1740 = vpack.c.bf16 %v1736, %v1736
        %v1741 = vpack.c.bf16 %v1738, %v1738
        %v1744 = vunpack.c.l.b16 %v1665
        %v1745 = vunpack.c.l.b16 %v1666
        %v1746 = vpack.c.b16 %v1745, %v1744
        %v1749 = vunpack.c.l.b16 %v1740
        %v1750 = vunpack.c.l.b16 %v1741
        %v1751 = vpack.c.b16 %v1750, %v1749
        %1752 = vrot.lane.b32.xlu0 %v1751, 64
        %v1753 = vpop.permute.xlu0 %1752
        %v1756 = vsel %vm1061, %v1746, %v1753
        %v1774 = vunpack.c.l.b16 %v1385
        %v1775 = vunpack.c.l.b16 %v1386
        %v1776 = vunpack.c.l.b16 %v1387
        %v1777 = vunpack.c.l.b16 %v1388
        %v1778 = vunpack.c.l.b16 %v1389
        %v1779 = vunpack.c.l.b16 %v1390
        %v1780 = vunpack.c.l.b16 %v1391
        %v1781 = vunpack.c.l.b16 %v1392
        %v1782 = vunpack.c.l.b16 %v1393
        %v1783 = vunpack.c.l.b16 %v1394
        %v1784 = vunpack.c.l.b16 %v1395
        %v1785 = vunpack.c.l.b16 %v1396
        %v1786 = vunpack.c.l.b16 %v1397
        %v1787 = vunpack.c.l.b16 %v1398
        %v1788 = vunpack.c.l.b16 %v1399
        %v1789 = vunpack.c.l.b16 %v1400
        %v1790 = vpack.c.b16 %v1775, %v1774
        %v1791 = vpack.c.b16 %v1777, %v1776
        %v1792 = vpack.c.b16 %v1779, %v1778
        %v1793 = vpack.c.b16 %v1781, %v1780
        %v1794 = vpack.c.b16 %v1783, %v1782
        %v1795 = vpack.c.b16 %v1785, %v1784
        %v1796 = vpack.c.b16 %v1787, %v1786
        %v1797 = vpack.c.b16 %v1789, %v1788
        %1806 = vmatpush.bf16.msra.mxu0 %v1797
        %1807 = vmatpush.bf16.msra.mxu0 %v1796
        %1808 = vmatpush.bf16.msra.mxu0 %v1795
        %1809 = vmatpush.bf16.msra.mxu0 %v1794
        %1810 = vmatpush.bf16.msra.mxu0 %v1793
        %1811 = vmatpush.bf16.msra.mxu0 %v1792
        %1812 = vmatpush.bf16.msra.mxu0 %v1791
        %1813 = vmatpush.bf16.msra.mxu0 %v1790
        %1814 = vmatmul.bf16.gmra.mxu0 %v1756
        %v1815 = vpop.f32.mrf.mxu0
        %v1816 = vadd.f32 %v1349, %v1815
        %v1817 = vpop.f32.mrf.mxu0
        %v1818 = vadd.f32 %v1350, %v1817
        %1819 = vdwg.mxu0
        %s1820 = scalar_lea.vmem %s678, 1 [#allocation10]
        %v1821 = vld [vmem:[%s1820] sm:$0x1]
        %s1822 = scalar_lea.vmem %s802, 1
        %v1823 = vld [vmem:[%s1822] sm:$0x1]
        %1824 = vadd.xlane.f32.xlu0 %v1816
        %v1825 = vpop.xlane.xlu0 %1824
        %1826 = vadd.xlane.f32.xlu0 %v1818
        %v1827 = vpop.xlane.xlu0 %1826
        %v1828 = vmul.f32 %v1825, %v1304
        %v1829 = vmul.f32 %v1827, %v1304
        %v1830 = vsub.f32 %v1816, %v1828
        %v1831 = vsub.f32 %v1818, %v1829
        %v1832 = vmul.f32 %v1830, %v1830
        %v1833 = vmul.f32 %v1831, %v1831
        %1834 = vadd.xlane.f32.xlu0 %v1832
        %v1835 = vpop.xlane.xlu0 %1834
        %1836 = vadd.xlane.f32.xlu0 %v1833
        %v1837 = vpop.xlane.xlu0 %1836
        %v1838 = vmul.f32 %v1835, %v1304
        %v1839 = vmul.f32 %v1837, %v1304
        %v1840 = vadd.f32 %v1838, 1e-06
        %v1841 = vadd.f32 %v1839, 1e-06
        %v1842 = vrsqrt.pop %v1840
        %v1843 = vmul.f32 %v1842, %v1840
        %v1844 = vmul.f32 %v1843, %v1842
        %v1845 = vmul.f32 0.5, %v1844
        %v1846 = vsub.f32 1.5, %v1845
        %v1847 = vmul.f32 %v1842, %v1846
        %vm1848 = vweird.f32 %v1840
        %vm1849 = vweird.f32 %v1842
        %vm1850 = vmor %vm1848, %vm1849
        %v1851 = vsel %vm1850, %v1842, %v1847
        %v1852 = vrsqrt.pop %v1841
        %v1853 = vmul.f32 %v1852, %v1841
        %v1854 = vmul.f32 %v1853, %v1852
        %v1855 = vmul.f32 0.5, %v1854
        %v1856 = vsub.f32 1.5, %v1855
        %v1857 = vmul.f32 %v1852, %v1856
        %vm1858 = vweird.f32 %v1841
        %vm1859 = vweird.f32 %v1852
        %vm1860 = vmor %vm1858, %vm1859
        %v1861 = vsel %vm1860, %v1852, %v1857
        %v1862 = vmul.f32 %v1830, %v1851
        %v1863 = vmul.f32 %v1831, %v1861
        %v1865 = vperm.slane %v1821, 0
        %v1867 = vmul.f32 %v1862, %v1865
        %v1868 = vmul.f32 %v1863, %v1865
        %v1870 = vperm.slane %v1823, 0
        %v1872 = vadd.f32 %v1867, %v1870
        %v1873 = vadd.f32 %v1868, %v1870
        %v1874 = vpack.c.bf16 %v1873, %v1872
        %v1875 = vld [vmem:[%s688] sm:$0xff]
        %v1876 = vld [vmem:[%s688 + $0x8] sm:$0xff]
        %v1877 = vld [vmem:[%s688 + $0x10] sm:$0xff]
        %v1878 = vld [vmem:[%s688 + $0x18] sm:$0xff]
        %v1879 = vld [vmem:[%s688 + $0x20] sm:$0xff]
        %v1880 = vld [vmem:[%s688 + $0x28] sm:$0xff]
        %v1881 = vld [vmem:[%s688 + $0x30] sm:$0xff]
        %v1882 = vld [vmem:[%s688 + $0x38] sm:$0xff]
        %v1883 = vld [vmem:[%s688 + $0x40] sm:$0xff]
        %v1884 = vld [vmem:[%s688 + $0x48] sm:$0xff]
        %v1885 = vld [vmem:[%s688 + $0x50] sm:$0xff]
        %v1886 = vld [vmem:[%s688 + $0x58] sm:$0xff]
        %v1887 = vld [vmem:[%s688 + $0x60] sm:$0xff]
        %v1888 = vld [vmem:[%s688 + $0x68] sm:$0xff]
        %v1889 = vld [vmem:[%s688 + $0x70] sm:$0xff]
        %v1890 = vld [vmem:[%s688 + $0x78] sm:$0xff]
        %v1891 = vld [vmem:[%s698] sm:$0x3]
        %v1893 = vperm.slane %v1891, 0
        %v1894 = vperm.slane %v1891, 1
        %v1913 = vunpack.c.l.b16 %v1875
        %v1914 = vunpack.c.h.b16 %v1875
        %v1915 = vunpack.c.l.b16 %v1876
        %v1916 = vunpack.c.h.b16 %v1876
        %v1917 = vunpack.c.l.b16 %v1877
        %v1918 = vunpack.c.h.b16 %v1877
        %v1919 = vunpack.c.l.b16 %v1878
        %v1920 = vunpack.c.h.b16 %v1878
        %v1921 = vunpack.c.l.b16 %v1879
        %v1922 = vunpack.c.h.b16 %v1879
        %v1923 = vunpack.c.l.b16 %v1880
        %v1924 = vunpack.c.h.b16 %v1880
        %v1925 = vunpack.c.l.b16 %v1881
        %v1926 = vunpack.c.h.b16 %v1881
        %v1927 = vunpack.c.l.b16 %v1882
        %v1928 = vunpack.c.h.b16 %v1882
        %v1929 = vunpack.c.l.b16 %v1883
        %v1930 = vunpack.c.h.b16 %v1883
        %v1931 = vunpack.c.l.b16 %v1884
        %v1932 = vunpack.c.h.b16 %v1884
        %v1933 = vunpack.c.l.b16 %v1885
        %v1934 = vunpack.c.h.b16 %v1885
        %v1935 = vunpack.c.l.b16 %v1886
        %v1936 = vunpack.c.h.b16 %v1886
        %v1937 = vunpack.c.l.b16 %v1887
        %v1938 = vunpack.c.h.b16 %v1887
        %v1939 = vunpack.c.l.b16 %v1888
        %v1940 = vunpack.c.h.b16 %v1888
        %v1941 = vunpack.c.l.b16 %v1889
        %v1942 = vunpack.c.h.b16 %v1889
        %v1943 = vunpack.c.l.b16 %v1890
        %v1944 = vunpack.c.h.b16 %v1890
        %v1945 = vpack.c.b16 %v1915, %v1913
        %v1946 = vpack.c.b16 %v1916, %v1914
        %v1947 = vpack.c.b16 %v1919, %v1917
        %v1948 = vpack.c.b16 %v1920, %v1918
        %v1949 = vpack.c.b16 %v1923, %v1921
        %v1950 = vpack.c.b16 %v1924, %v1922
        %v1951 = vpack.c.b16 %v1927, %v1925
        %v1952 = vpack.c.b16 %v1928, %v1926
        %v1953 = vpack.c.b16 %v1931, %v1929
        %v1954 = vpack.c.b16 %v1932, %v1930
        %v1955 = vpack.c.b16 %v1935, %v1933
        %v1956 = vpack.c.b16 %v1936, %v1934
        %v1957 = vpack.c.b16 %v1939, %v1937
        %v1958 = vpack.c.b16 %v1940, %v1938
        %v1959 = vpack.c.b16 %v1943, %v1941
        %v1960 = vpack.c.b16 %v1944, %v1942
        %1977 = vmatpush.bf16.msra.mxu0 %v1959
        %1978 = vmatpush.bf16.msra.mxu0 %v1957
        %1979 = vmatpush.bf16.msra.mxu0 %v1955
        %1980 = vmatpush.bf16.msra.mxu0 %v1953
        %1981 = vmatpush.bf16.msra.mxu0 %v1951
        %1982 = vmatpush.bf16.msra.mxu0 %v1949
        %1983 = vmatpush.bf16.msra.mxu0 %v1947
        %1984 = vmatpush.bf16.msra.mxu0 %v1945
        %1985 = vmatmul.bf16.gmra.mxu0 %v1874
        %v1986 = vpop.f32.mrf.mxu0
        %v1987 = vadd.f32 %v1893, %v1986
        %v1988 = vpop.f32.mrf.mxu0
        %v1989 = vadd.f32 %v1893, %v1988
        %1990 = vdwg.mxu0
        %1991 = vmatpush.bf16.msra.mxu0 %v1960
        %1992 = vmatpush.bf16.msra.mxu0 %v1958
        %1993 = vmatpush.bf16.msra.mxu0 %v1956
        %1994 = vmatpush.bf16.msra.mxu0 %v1954
        %1995 = vmatpush.bf16.msra.mxu0 %v1952
        %1996 = vmatpush.bf16.msra.mxu0 %v1950
        %1997 = vmatpush.bf16.msra.mxu0 %v1948
        %1998 = vmatpush.bf16.msra.mxu0 %v1946
        %1999 = vmatmul.bf16.gmra.mxu0 %v1874
        %v2000 = vpop.f32.mrf.mxu0
        %v2001 = vadd.f32 %v1894, %v2000
        %v2002 = vpop.f32.mrf.mxu0
        %v2003 = vadd.f32 %v1894, %v2002
        %2004 = vdwg.mxu0
        %v2005 = vmax.f32 %v1987, 0.0
        %v2006 = vmax.f32 %v2001, 0.0
        %v2007 = vmax.f32 %v1989, 0.0
        %v2008 = vmax.f32 %v2003, 0.0
        %v2009 = vpack.c.bf16 %v2007, %v2005
        %v2010 = vpack.c.bf16 %v2008, %v2006
        %v2011 = vld [vmem:[%s708] sm:$0xf]
        %v2012 = vld [vmem:[%s708 + $0x4] sm:$0xf]
        %v2013 = vld [vmem:[%s708 + $0x8] sm:$0xf]
        %v2014 = vld [vmem:[%s708 + $0xc] sm:$0xf]
        %v2015 = vld [vmem:[%s708 + $0x10] sm:$0xf]
        %v2016 = vld [vmem:[%s708 + $0x14] sm:$0xf]
        %v2017 = vld [vmem:[%s708 + $0x18] sm:$0xf]
        %v2018 = vld [vmem:[%s708 + $0x1c] sm:$0xf]
        %v2019 = vld [vmem:[%s708 + $0x20] sm:$0xf]
        %v2020 = vld [vmem:[%s708 + $0x24] sm:$0xf]
        %v2021 = vld [vmem:[%s708 + $0x28] sm:$0xf]
        %v2022 = vld [vmem:[%s708 + $0x2c] sm:$0xf]
        %v2023 = vld [vmem:[%s708 + $0x30] sm:$0xf]
        %v2024 = vld [vmem:[%s708 + $0x34] sm:$0xf]
        %v2025 = vld [vmem:[%s708 + $0x38] sm:$0xf]
        %v2026 = vld [vmem:[%s708 + $0x3c] sm:$0xf]
        %v2027 = vld [vmem:[%s708 + $0x40] sm:$0xf]
        %v2028 = vld [vmem:[%s708 + $0x44] sm:$0xf]
        %v2029 = vld [vmem:[%s708 + $0x48] sm:$0xf]
        %v2030 = vld [vmem:[%s708 + $0x4c] sm:$0xf]
        %v2031 = vld [vmem:[%s708 + $0x50] sm:$0xf]
        %v2032 = vld [vmem:[%s708 + $0x54] sm:$0xf]
        %v2033 = vld [vmem:[%s708 + $0x58] sm:$0xf]
        %v2034 = vld [vmem:[%s708 + $0x5c] sm:$0xf]
        %v2035 = vld [vmem:[%s708 + $0x60] sm:$0xf]
        %v2036 = vld [vmem:[%s708 + $0x64] sm:$0xf]
        %v2037 = vld [vmem:[%s708 + $0x68] sm:$0xf]
        %v2038 = vld [vmem:[%s708 + $0x6c] sm:$0xf]
        %v2039 = vld [vmem:[%s708 + $0x70] sm:$0xf]
        %v2040 = vld [vmem:[%s708 + $0x74] sm:$0xf]
        %v2041 = vld [vmem:[%s708 + $0x78] sm:$0xf]
        %v2042 = vld [vmem:[%s708 + $0x7c] sm:$0xf]
        %v2043 = vld [vmem:[%s805] sm:$0x1]
        %v2045 = vperm.slane %v2043, 0
        %v2079 = vunpack.c.l.b16 %v2011
        %v2080 = vunpack.c.l.b16 %v2012
        %v2081 = vunpack.c.l.b16 %v2013
        %v2082 = vunpack.c.l.b16 %v2014
        %v2083 = vunpack.c.l.b16 %v2015
        %v2084 = vunpack.c.l.b16 %v2016
        %v2085 = vunpack.c.l.b16 %v2017
        %v2086 = vunpack.c.l.b16 %v2018
        %v2087 = vunpack.c.l.b16 %v2019
        %v2088 = vunpack.c.l.b16 %v2020
        %v2089 = vunpack.c.l.b16 %v2021
        %v2090 = vunpack.c.l.b16 %v2022
        %v2091 = vunpack.c.l.b16 %v2023
        %v2092 = vunpack.c.l.b16 %v2024
        %v2093 = vunpack.c.l.b16 %v2025
        %v2094 = vunpack.c.l.b16 %v2026
        %v2095 = vunpack.c.l.b16 %v2027
        %v2096 = vunpack.c.l.b16 %v2028
        %v2097 = vunpack.c.l.b16 %v2029
        %v2098 = vunpack.c.l.b16 %v2030
        %v2099 = vunpack.c.l.b16 %v2031
        %v2100 = vunpack.c.l.b16 %v2032
        %v2101 = vunpack.c.l.b16 %v2033
        %v2102 = vunpack.c.l.b16 %v2034
        %v2103 = vunpack.c.l.b16 %v2035
        %v2104 = vunpack.c.l.b16 %v2036
        %v2105 = vunpack.c.l.b16 %v2037
        %v2106 = vunpack.c.l.b16 %v2038
        %v2107 = vunpack.c.l.b16 %v2039
        %v2108 = vunpack.c.l.b16 %v2040
        %v2109 = vunpack.c.l.b16 %v2041
        %v2110 = vunpack.c.l.b16 %v2042
        %v2111 = vpack.c.b16 %v2080, %v2079
        %v2112 = vpack.c.b16 %v2082, %v2081
        %v2113 = vpack.c.b16 %v2084, %v2083
        %v2114 = vpack.c.b16 %v2086, %v2085
        %v2115 = vpack.c.b16 %v2088, %v2087
        %v2116 = vpack.c.b16 %v2090, %v2089
        %v2117 = vpack.c.b16 %v2092, %v2091
        %v2118 = vpack.c.b16 %v2094, %v2093
        %v2119 = vpack.c.b16 %v2096, %v2095
        %v2120 = vpack.c.b16 %v2098, %v2097
        %v2121 = vpack.c.b16 %v2100, %v2099
        %v2122 = vpack.c.b16 %v2102, %v2101
        %v2123 = vpack.c.b16 %v2104, %v2103
        %v2124 = vpack.c.b16 %v2106, %v2105
        %v2125 = vpack.c.b16 %v2108, %v2107
        %v2126 = vpack.c.b16 %v2110, %v2109
        %2143 = vmatpush.bf16.msra.mxu0 %v2118
        %2144 = vmatpush.bf16.msra.mxu0 %v2117
        %2145 = vmatpush.bf16.msra.mxu0 %v2116
        %2146 = vmatpush.bf16.msra.mxu0 %v2115
        %2147 = vmatpush.bf16.msra.mxu0 %v2114
        %2148 = vmatpush.bf16.msra.mxu0 %v2113
        %2149 = vmatpush.bf16.msra.mxu0 %v2112
        %2150 = vmatpush.bf16.msra.mxu0 %v2111
        %2151 = vmatmul.bf16.gmra.mxu0 %v2009
        %v2152 = vpop.f32.mrf.mxu0
        %v2153 = vadd.f32 %v2045, %v2152
        %v2154 = vpop.f32.mrf.mxu0
        %v2155 = vadd.f32 %v2045, %v2154
        %2156 = vdwg.mxu0
        %2157 = vmatpush.bf16.msra.mxu0 %v2126
        %2158 = vmatpush.bf16.msra.mxu0 %v2125
        %2159 = vmatpush.bf16.msra.mxu0 %v2124
        %2160 = vmatpush.bf16.msra.mxu0 %v2123
        %2161 = vmatpush.bf16.msra.mxu0 %v2122
        %2162 = vmatpush.bf16.msra.mxu0 %v2121
        %2163 = vmatpush.bf16.msra.mxu0 %v2120
        %2164 = vmatpush.bf16.msra.mxu0 %v2119
        %2165 = vmatmul.bf16.gmra.mxu0 %v2010
        %v2166 = vpop.f32.mrf.mxu0
        %v2167 = vadd.f32 %v2153, %v2166
        %v2168 = vpop.f32.mrf.mxu0
        %v2169 = vadd.f32 %v2155, %v2168
        %2170 = vdwg.mxu0
        %v2171 = vadd.f32 %v2167, %v1872
        %v2172 = vadd.f32 %v2169, %v1873
        %v2173 = vld [vmem:[%s808] sm:$0x1]
        %v2174 = vld [vmem:[%s811] sm:$0x1]
        %2175 = vadd.xlane.f32.xlu0 %v2171
        %v2176 = vpop.xlane.xlu0 %2175
        %2177 = vadd.xlane.f32.xlu0 %v2172
        %v2178 = vpop.xlane.xlu0 %2177
        %v2179 = vmul.f32 %v2176, %v1304
        %v2180 = vmul.f32 %v2178, %v1304
        %v2181 = vsub.f32 %v2171, %v2179
        %v2182 = vsub.f32 %v2172, %v2180
        %v2183 = vmul.f32 %v2181, %v2181
        %v2184 = vmul.f32 %v2182, %v2182
        %2185 = vadd.xlane.f32.xlu0 %v2183
        %v2186 = vpop.xlane.xlu0 %2185
        %2187 = vadd.xlane.f32.xlu0 %v2184
        %v2188 = vpop.xlane.xlu0 %2187
        %v2189 = vmul.f32 %v2186, %v1304
        %v2190 = vmul.f32 %v2188, %v1304
        %v2191 = vadd.f32 %v2189, 1e-06
        %v2192 = vadd.f32 %v2190, 1e-06
        %v2193 = vrsqrt.pop %v2191
        %v2194 = vmul.f32 %v2193, %v2191
        %v2195 = vmul.f32 %v2194, %v2193
        %v2196 = vmul.f32 0.5, %v2195
        %v2197 = vsub.f32 1.5, %v2196
        %v2198 = vmul.f32 %v2193, %v2197
        %vm2199 = vweird.f32 %v2191
        %vm2200 = vweird.f32 %v2193
        %vm2201 = vmor %vm2199, %vm2200
        %v2202 = vsel %vm2201, %v2193, %v2198
        %v2203 = vrsqrt.pop %v2192
        %v2204 = vmul.f32 %v2203, %v2192
        %v2205 = vmul.f32 %v2204, %v2203
        %v2206 = vmul.f32 0.5, %v2205
        %v2207 = vsub.f32 1.5, %v2206
        %v2208 = vmul.f32 %v2203, %v2207
        %vm2209 = vweird.f32 %v2192
        %vm2210 = vweird.f32 %v2203
        %vm2211 = vmor %vm2209, %vm2210
        %v2212 = vsel %vm2211, %v2203, %v2208
        %v2213 = vmul.f32 %v2181, %v2202
        %v2214 = vmul.f32 %v2182, %v2212
        %v2216 = vperm.slane %v2173, 0
        %v2218 = vmul.f32 %v2213, %v2216
        %v2219 = vmul.f32 %v2214, %v2216
        %v2221 = vperm.slane %v2174, 0
        %v2223 = vadd.f32 %v2218, %v2221
        %v2224 = vadd.f32 %v2219, %v2221
        %2225 = vst [vmem:[%s797] sm:$0xff] %v2223
        %2226 = vst [vmem:[%s797 + $0x8] sm:$0xff] %v2224
        %s2227 = sand.u32 %s373, 1
        %s2228 = scalar_lea.sflag [#allocation4], %s2227
        %s2229 = sand.u32 %s373, 1
        %s2230 = smul.addr %s2229, 16
        %s2231 = scalar_lea.vmem [#allocation16], %s2230
        // Predicated region
        $region105: #{tpu_custom_call.1} parent=67 // pred_check
          %p2232 = pneg %p383
        $region106: #{tpu_custom_call.1} parent=67 // pred_check_branch
          %2234 = sbr.rel (%p2232) target = $region108
        $region107: #{tpu_custom_call.1} parent=67 // pred_region
          %s2235 = smul.u32 2, %s45
          %2237 = vsyncadd %s2228, 0
          %s2238 = smul.addr %s2235, 8
          %s2239 = scalar_lea.hbm %s12, %s2238
          %s2240 = sshll.u32 %s2231, 4
          %s2241 = int_to_ptr.vmem [resolvable:$true] %s2240
          %s2242 = sshll.u32 %s2239, 4
          %s2243 = int_to_ptr.hbm [resolvable:$true] %s2242
          %2248 = dma.vmem_to_hbm [thread:$0]  %s2241, 256, %s2243, %s2228, 128, 128, 8
        $region108: #{tpu_custom_call.1} parent=67 // pred_fallthru
          _
      $region68: #{tpu_custom_call.1} parent=5 // pred_fallthru
        _
      %p2249 = scmp.le.s32.totalorder 2, %s36
      // Predicated region
      $region109: #{tpu_custom_call.1} parent=5 // pred_check
        %p2250 = pneg %p2249
      $region110: #{tpu_custom_call.1} parent=5 // pred_check_branch
        %2252 = sbr.rel (%p2250) target = $region112
      $region111: #{tpu_custom_call.1} parent=5 // pred_region
        %s2253 = ssub.s32 %s36, 2
        // Predicated region
        $region113: #{tpu_custom_call.1} parent=111 // pred_check
          %p2254 = pneg %p389
        $region114: #{tpu_custom_call.1} parent=111 // pred_check_branch
          %2256 = sbr.rel (%p2254) target = $region116
        $region115: #{tpu_custom_call.1} parent=111 // pred_region
          %s2257 = sand.u32 %s374, 1
          %s2258 = scalar_lea.sflag [#allocation4], %s2257
          %s2259 = sand.u32 %s374, 1
          %s2260 = smul.addr %s2259, 16
          %s2261 = scalar_lea.vmem [#allocation16], %s2260
          %2263 = dma.done %s2258, 256
        $region116: #{tpu_custom_call.1} parent=111 // pred_fallthru
          _
      $region112: #{tpu_custom_call.1} parent=5 // pred_fallthru
        _
    $region6: #{tpu_custom_call.1} parent=1 // loop_footer
      %s40 = sadd.s32 1, %s36
    $region7: #{tpu_custom_call.1} parent=1 // loop_footer_branch
      %35 = sbr.rel target = $region3
    $region8: #{tpu_custom_call.1} parent=1 // loop_exit
      _
    %2264 = vsyncpa [#allocation3], 1
    %s2265 = scalar_lea.sflag [#allocation3], 1
    %2266 = vsyncpa %s2265, 1
    %2267 = vsyncpa [#allocation6], 1
    %s2268 = scalar_lea.sflag [#allocation6], 1
    %2269 = vsyncpa %s2268, 1
    %2270 = vsyncpa [#allocation9], 1
    %s2271 = scalar_lea.sflag [#allocation9], 1
    %2272 = vsyncpa %s2271, 1
    %2273 = vsyncpa [#allocation12], 1
    %s2274 = scalar_lea.sflag [#allocation12], 1
    %2275 = vsyncpa %s2274, 1
    %2276 = vsyncpa [#allocation15], 1
    %s2277 = scalar_lea.sflag [#allocation15], 1
    %2278 = vsyncpa %s2277, 1
    %2279 = vsyncpa [#allocation4], 1
    %s2280 = scalar_lea.sflag [#allocation4], 1
    %2281 = vsyncpa %s2280, 1

</llo_original>
